<compile_context>
chip_gen: v6e
topology: v6e:2x2x1
jax: 0.10.0
libtpu: 0.0.40
codegen_flags: <defaults>
</compile_context>

<pallas_src>
import math

import jax
import jax.numpy as jnp
from jax.experimental import pallas as pl
from jax.experimental.pallas import tpu as pltpu

D_IN = 28 * 28          # 784
ENC_DIMS = [(D_IN, 128), (128, 64), (64, 12), (12, 3)]
DEC_DIMS = [(3, 12), (12, 64), (64, 128), (128, D_IN)]


def _round_up(x, m):
    return ((x + m - 1) // m) * m


def _choose_tile(bp, requested):
    """Largest multiple-of-16 divisor of bp that is <= requested, preferring
    divisors that leave >= 2 grid steps (feeds both TensorCores on v7x)."""
    cands = [t for t in range(16, bp + 1, 16) if bp % t == 0]
    le = [t for t in cands if t <= requested]
    if not le:
        return cands[0]
    multi = [t for t in le if bp // t >= 2]
    return max(multi) if multi else max(le)


def autoencoder_kernel(x_ref,
                       ew0, eb0, ew1, eb1, ew2, eb2, ew3, eb3,
                       dw0, db0, dw1, db1, dw2, db2, dw3, db3,
                       enc_ref, dec_ref):
    def dense(h, w_ref, b_ref):
        # bf16 operands into the MXU, f32 accumulation, f32 bias add.
        return jnp.dot(h.astype(jnp.bfloat16), w_ref[...],
                       preferred_element_type=jnp.float32) + b_ref[...]

    h = x_ref[...]                      # (TILE_B, 784) bf16

    # --- encoder: Linear -> Tanh (x3), final Linear (no activation) ---
    h = jnp.tanh(dense(h, ew0, eb0))
    h = jnp.tanh(dense(h, ew1, eb1))
    h = jnp.tanh(dense(h, ew2, eb2))
    encoded = dense(h, ew3, eb3)        # (TILE_B, 3) f32
    enc_ref[...] = encoded.astype(enc_ref.dtype)

    # --- decoder: Linear -> Tanh (x3), final Linear -> Sigmoid ---
    h = jnp.tanh(dense(encoded, dw0, db0))
    h = jnp.tanh(dense(h, dw1, db1))
    h = jnp.tanh(dense(h, dw2, db2))
    logits = dense(h, dw3, db3)         # (TILE_B, 784) f32
    dec_ref[...] = jax.nn.sigmoid(logits).astype(dec_ref.dtype)


def init_params(key):
    """Deterministic init mimicking PyTorch nn.Linear default (U[-1/sqrt(fan_in), +])."""
    params = []
    for in_dim, out_dim in ENC_DIMS + DEC_DIMS:
        key, kw, kb = jax.random.split(key, 3)
        bound = 1.0 / math.sqrt(in_dim)
        # stored as (in, out): transposed relative to PyTorch's (out, in)
        w = jax.random.uniform(kw, (in_dim, out_dim), jnp.float32, -bound, bound)
        b = jax.random.uniform(kb, (1, out_dim), jnp.float32, -bound, bound)
        params.append((w, b))
    return params


def _prepare_params(params):
    """Weights in bf16 (MXU operands), biases in f32 (VPU add)."""
    return [(w.astype(jnp.bfloat16), b.astype(jnp.float32)) for (w, b) in params]


def autoencoder_forward(x, params, tile_b=512):
    B, D = x.shape
    assert D == D_IN

    # Batch padded only to a multiple of 16 (waste < 16 rows); big I/O in bf16.
    Bp = _round_up(B, 16)
    xb = x.astype(jnp.bfloat16)
    if Bp != B:
        xb = jnp.pad(xb, ((0, Bp - B), (0, 0)))
    tile_b = _choose_tile(Bp, tile_b)

    prepped = _prepare_params(params)

    args = [xb]
    in_specs = [pl.BlockSpec((tile_b, D_IN), lambda i: (i, 0))]
    for w, b in prepped:
        args.extend([w, b])
        in_specs.append(pl.BlockSpec(w.shape, lambda i: (0, 0)))   # VMEM-resident
        in_specs.append(pl.BlockSpec(b.shape, lambda i: (0, 0)))

    out_shape = (
        jax.ShapeDtypeStruct((Bp, 3), jnp.float32),        # encoded
        jax.ShapeDtypeStruct((Bp, D_IN), jnp.bfloat16),    # decoded
    )
    out_specs = (
        pl.BlockSpec((tile_b, 3), lambda i: (i, 0)),
        pl.BlockSpec((tile_b, D_IN), lambda i: (i, 0)),
    )

    # Advisory cost estimate for XLA scheduling around the custom call.
    per_row_macs = sum(i * o for i, o in ENC_DIMS + DEC_DIMS)
    per_row_trans = 128 + 64 + 12 + 12 + 64 + 128 + D_IN          # tanh x6 + sigmoid
    param_bytes = sum(w.size * w.dtype.itemsize + b.size * b.dtype.itemsize
                      for w, b in prepped)
    cost = pl.CostEstimate(
        flops=2 * Bp * per_row_macs,
        transcendentals=Bp * per_row_trans,
        bytes_accessed=Bp * D_IN * 2 * 2 + Bp * 3 * 4 + param_bytes,
    )

    encoded, decoded = pl.pallas_call(
        autoencoder_kernel,
        out_shape=out_shape,
        grid=(Bp // tile_b,),
        in_specs=in_specs,
        out_specs=out_specs,
        compiler_params=pltpu.CompilerParams(
            dimension_semantics=("parallel",),
            vmem_limit_bytes=32 * 1024 * 1024),
        cost_estimate=cost,
    )(*args)

    if Bp != B:
        encoded, decoded = encoded[:B], decoded[:B]
    return encoded, decoded


def autoencoder_ref(x, params):
    """Pure-JAX reference with the same bf16-matmul / f32-accumulate math."""
    def dense(h, w, b):
        return jnp.dot(h.astype(jnp.bfloat16), w.astype(jnp.bfloat16),
                       preferred_element_type=jnp.float32) + b

    h = x.astype(jnp.float32)
    for (w, b) in params[:3]:
        h = jnp.tanh(dense(h, w, b))
    encoded = dense(h, params[3][0], params[3][1])
    h = encoded
    for (w, b) in params[4:7]:
        h = jnp.tanh(dense(h, w, b))
    decoded = jax.nn.sigmoid(dense(h, params[7][0], params[7][1]))
    return encoded, decoded


if __name__ == "__main__":
    key = jax.random.PRNGKey(0)
    key, kx = jax.random.split(key)

    B = 32  # small test batch; feature dim 784 fixed by the module
    x = jax.random.uniform(kx, (B, D_IN), jnp.float32)

    params = init_params(key)

    # With B=32 the tile chooser picks tile_b=16 -> grid=(2,), exercising a
    # multi-step pipeline; production batches use the default tile_b=512.
    encoded, decoded = autoencoder_forward(x, params)
    jax.block_until_ready((encoded, decoded))

    enc_ref, dec_ref = autoencoder_ref(x, params)
    assert encoded.shape == (B, 3) and decoded.shape == (B, D_IN)
    assert encoded.dtype == jnp.float32 and decoded.dtype == jnp.bfloat16
    assert jnp.allclose(encoded, enc_ref, atol=5e-3, rtol=5e-3)
    # decoded is stored in bf16 (sigmoid outputs in [0,1]); allow bf16 rounding.
    assert jnp.allclose(decoded.astype(jnp.float32), dec_ref, atol=1e-2, rtol=2e-2)

    print("KERNEL_OK")
</pallas_src>

<mosaic_0001>
module attributes {stable_mosaic.version = 11 : i64} {
  func.func @autoencoder_kernel(%arg0: i32, %arg1: memref<16x784xbf16, #tpu.memory_space<vmem>>, %arg2: memref<784x128xbf16, #tpu.memory_space<vmem>>, %arg3: memref<1x128xf32, #tpu.memory_space<vmem>>, %arg4: memref<128x64xbf16, #tpu.memory_space<vmem>>, %arg5: memref<1x64xf32, #tpu.memory_space<vmem>>, %arg6: memref<64x12xbf16, #tpu.memory_space<vmem>>, %arg7: memref<1x12xf32, #tpu.memory_space<vmem>>, %arg8: memref<12x3xbf16, #tpu.memory_space<vmem>>, %arg9: memref<1x3xf32, #tpu.memory_space<vmem>>, %arg10: memref<3x12xbf16, #tpu.memory_space<vmem>>, %arg11: memref<1x12xf32, #tpu.memory_space<vmem>>, %arg12: memref<12x64xbf16, #tpu.memory_space<vmem>>, %arg13: memref<1x64xf32, #tpu.memory_space<vmem>>, %arg14: memref<64x128xbf16, #tpu.memory_space<vmem>>, %arg15: memref<1x128xf32, #tpu.memory_space<vmem>>, %arg16: memref<128x784xbf16, #tpu.memory_space<vmem>>, %arg17: memref<1x784xf32, #tpu.memory_space<vmem>>, %arg18: memref<16x3xf32, #tpu.memory_space<vmem>>, %arg19: memref<16x784xbf16, #tpu.memory_space<vmem>>) attributes {dimension_semantics = [#tpu.dimension_semantics<parallel>], iteration_bounds = array<i64: 2>, scalar_prefetch = 0 : i64, scratch_operands = 0 : i64, tpu.core_type = #tpu.core_type<tc>, window_params = [{transform_indices = @transform_0, window_bounds = array<i64: 16, 784>}, {pipeline_mode = #tpu.pipeline_mode<synchronous>, transform_indices = @transform_1, window_bounds = array<i64: 784, 128>}, {pipeline_mode = #tpu.pipeline_mode<synchronous>, transform_indices = @transform_2, window_bounds = array<i64: 1, 128>}, {pipeline_mode = #tpu.pipeline_mode<synchronous>, transform_indices = @transform_3, window_bounds = array<i64: 128, 64>}, {pipeline_mode = #tpu.pipeline_mode<synchronous>, transform_indices = @transform_4, window_bounds = array<i64: 1, 64>}, {pipeline_mode = #tpu.pipeline_mode<synchronous>, transform_indices = @transform_5, window_bounds = array<i64: 64, 12>}, {pipeline_mode = #tpu.pipeline_mode<synchronous>, transform_indices = @transform_6, window_bounds = array<i64: 1, 12>}, {pipeline_mode = #tpu.pipeline_mode<synchronous>, transform_indices = @transform_7, window_bounds = array<i64: 12, 3>}, {pipeline_mode = #tpu.pipeline_mode<synchronous>, transform_indices = @transform_8, window_bounds = array<i64: 1, 3>}, {pipeline_mode = #tpu.pipeline_mode<synchronous>, transform_indices = @transform_9, window_bounds = array<i64: 3, 12>}, {pipeline_mode = #tpu.pipeline_mode<synchronous>, transform_indices = @transform_10, window_bounds = array<i64: 1, 12>}, {pipeline_mode = #tpu.pipeline_mode<synchronous>, transform_indices = @transform_11, window_bounds = array<i64: 12, 64>}, {pipeline_mode = #tpu.pipeline_mode<synchronous>, transform_indices = @transform_12, window_bounds = array<i64: 1, 64>}, {pipeline_mode = #tpu.pipeline_mode<synchronous>, transform_indices = @transform_13, window_bounds = array<i64: 64, 128>}, {pipeline_mode = #tpu.pipeline_mode<synchronous>, transform_indices = @transform_14, window_bounds = array<i64: 1, 128>}, {pipeline_mode = #tpu.pipeline_mode<synchronous>, transform_indices = @transform_15, window_bounds = array<i64: 128, 784>}, {pipeline_mode = #tpu.pipeline_mode<synchronous>, transform_indices = @transform_16, window_bounds = array<i64: 1, 784>}, {transform_indices = @transform_17, window_bounds = array<i64: 16, 3>}, {transform_indices = @transform_18, window_bounds = array<i64: 16, 784>}]} {
    %c0 = arith.constant 0 : index
    %c0_0 = arith.constant 0 : index
    %0 = vector.load %arg1[%c0, %c0_0] : memref<16x784xbf16, #tpu.memory_space<vmem>>, vector<16x784xbf16>
    %c0_1 = arith.constant 0 : index
    %c0_2 = arith.constant 0 : index
    %1 = vector.load %arg2[%c0_1, %c0_2] : memref<784x128xbf16, #tpu.memory_space<vmem>>, vector<784x128xbf16>
    %cst = arith.constant dense<0.000000e+00> : vector<16x128xf32>
    %2 = tpu.matmul %0, %1, %cst {dimension_numbers = #tpu.dot_dimension_numbers<[1], [0], [0], [1], [0, 0, 1, 1], [], []>} : vector<16x784xbf16>, vector<784x128xbf16>, vector<16x128xf32> -> vector<16x128xf32>
    %c0_3 = arith.constant 0 : index
    %c0_4 = arith.constant 0 : index
    %3 = vector.load %arg3[%c0_3, %c0_4] : memref<1x128xf32, #tpu.memory_space<vmem>>, vector<1x128xf32>
    %4 = vector.broadcast %3 : vector<1x128xf32> to vector<16x128xf32>
    %5 = arith.addf %2, %4 : vector<16x128xf32>
    %6 = math.tanh %5 : vector<16x128xf32>
    %7 = arith.truncf %6 : vector<16x128xf32> to vector<16x128xbf16>
    %c0_5 = arith.constant 0 : index
    %c0_6 = arith.constant 0 : index
    %8 = vector.load %arg4[%c0_5, %c0_6] : memref<128x64xbf16, #tpu.memory_space<vmem>>, vector<128x64xbf16>
    %cst_7 = arith.constant dense<0.000000e+00> : vector<16x64xf32>
    %9 = tpu.matmul %7, %8, %cst_7 {dimension_numbers = #tpu.dot_dimension_numbers<[1], [0], [0], [1], [0, 0, 1, 1], [], []>} : vector<16x128xbf16>, vector<128x64xbf16>, vector<16x64xf32> -> vector<16x64xf32>
    %c0_8 = arith.constant 0 : index
    %c0_9 = arith.constant 0 : index
    %10 = vector.load %arg5[%c0_8, %c0_9] : memref<1x64xf32, #tpu.memory_space<vmem>>, vector<1x64xf32>
    %11 = vector.broadcast %10 : vector<1x64xf32> to vector<16x64xf32>
    %12 = arith.addf %9, %11 : vector<16x64xf32>
    %13 = math.tanh %12 : vector<16x64xf32>
    %14 = arith.truncf %13 : vector<16x64xf32> to vector<16x64xbf16>
    %c0_10 = arith.constant 0 : index
    %c0_11 = arith.constant 0 : index
    %15 = vector.load %arg6[%c0_10, %c0_11] : memref<64x12xbf16, #tpu.memory_space<vmem>>, vector<64x12xbf16>
    %cst_12 = arith.constant dense<0.000000e+00> : vector<16x12xf32>
    %16 = tpu.matmul %14, %15, %cst_12 {dimension_numbers = #tpu.dot_dimension_numbers<[1], [0], [0], [1], [0, 0, 1, 1], [], []>} : vector<16x64xbf16>, vector<64x12xbf16>, vector<16x12xf32> -> vector<16x12xf32>
    %c0_13 = arith.constant 0 : index
    %c0_14 = arith.constant 0 : index
    %17 = vector.load %arg7[%c0_13, %c0_14] : memref<1x12xf32, #tpu.memory_space<vmem>>, vector<1x12xf32>
    %18 = vector.broadcast %17 : vector<1x12xf32> to vector<16x12xf32>
    %19 = arith.addf %16, %18 : vector<16x12xf32>
    %20 = math.tanh %19 : vector<16x12xf32>
    %21 = arith.truncf %20 : vector<16x12xf32> to vector<16x12xbf16>
    %c0_15 = arith.constant 0 : index
    %c0_16 = arith.constant 0 : index
    %22 = vector.load %arg8[%c0_15, %c0_16] : memref<12x3xbf16, #tpu.memory_space<vmem>>, vector<12x3xbf16>
    %cst_17 = arith.constant dense<0.000000e+00> : vector<16x3xf32>
    %23 = tpu.matmul %21, %22, %cst_17 {dimension_numbers = #tpu.dot_dimension_numbers<[1], [0], [0], [1], [0, 0, 1, 1], [], []>} : vector<16x12xbf16>, vector<12x3xbf16>, vector<16x3xf32> -> vector<16x3xf32>
    %c0_18 = arith.constant 0 : index
    %c0_19 = arith.constant 0 : index
    %24 = vector.load %arg9[%c0_18, %c0_19] : memref<1x3xf32, #tpu.memory_space<vmem>>, vector<1x3xf32>
    %25 = vector.broadcast %24 : vector<1x3xf32> to vector<16x3xf32>
    %26 = arith.addf %23, %25 : vector<16x3xf32>
    %c0_20 = arith.constant 0 : index
    %c0_21 = arith.constant 0 : index
    %27 = vector.load %arg18[%c0_20, %c0_21] : memref<16x3xf32, #tpu.memory_space<vmem>>, vector<16x3xf32>
    tpu.vector_store %arg18[%c0_20, %c0_21], %26 {strides = array<i32>} : memref<16x3xf32, #tpu.memory_space<vmem>>, vector<16x3xf32>,
    %28 = arith.truncf %26 : vector<16x3xf32> to vector<16x3xbf16>
    %c0_22 = arith.constant 0 : index
    %c0_23 = arith.constant 0 : index
    %29 = vector.load %arg10[%c0_22, %c0_23] : memref<3x12xbf16, #tpu.memory_space<vmem>>, vector<3x12xbf16>
    %cst_24 = arith.constant dense<0.000000e+00> : vector<16x12xf32>
    %30 = tpu.matmul %28, %29, %cst_24 {dimension_numbers = #tpu.dot_dimension_numbers<[1], [0], [0], [1], [0, 0, 1, 1], [], []>} : vector<16x3xbf16>, vector<3x12xbf16>, vector<16x12xf32> -> vector<16x12xf32>
    %c0_25 = arith.constant 0 : index
    %c0_26 = arith.constant 0 : index
    %31 = vector.load %arg11[%c0_25, %c0_26] : memref<1x12xf32, #tpu.memory_space<vmem>>, vector<1x12xf32>
    %32 = vector.broadcast %31 : vector<1x12xf32> to vector<16x12xf32>
    %33 = arith.addf %30, %32 : vector<16x12xf32>
    %34 = math.tanh %33 : vector<16x12xf32>
    %35 = arith.truncf %34 : vector<16x12xf32> to vector<16x12xbf16>
    %c0_27 = arith.constant 0 : index
    %c0_28 = arith.constant 0 : index
    %36 = vector.load %arg12[%c0_27, %c0_28] : memref<12x64xbf16, #tpu.memory_space<vmem>>, vector<12x64xbf16>
    %cst_29 = arith.constant dense<0.000000e+00> : vector<16x64xf32>
    %37 = tpu.matmul %35, %36, %cst_29 {dimension_numbers = #tpu.dot_dimension_numbers<[1], [0], [0], [1], [0, 0, 1, 1], [], []>} : vector<16x12xbf16>, vector<12x64xbf16>, vector<16x64xf32> -> vector<16x64xf32>
    %c0_30 = arith.constant 0 : index
    %c0_31 = arith.constant 0 : index
    %38 = vector.load %arg13[%c0_30, %c0_31] : memref<1x64xf32, #tpu.memory_space<vmem>>, vector<1x64xf32>
    %39 = vector.broadcast %38 : vector<1x64xf32> to vector<16x64xf32>
    %40 = arith.addf %37, %39 : vector<16x64xf32>
    %41 = math.tanh %40 : vector<16x64xf32>
    %42 = arith.truncf %41 : vector<16x64xf32> to vector<16x64xbf16>
    %c0_32 = arith.constant 0 : index
    %c0_33 = arith.constant 0 : index
    %43 = vector.load %arg14[%c0_32, %c0_33] : memref<64x128xbf16, #tpu.memory_space<vmem>>, vector<64x128xbf16>
    %cst_34 = arith.constant dense<0.000000e+00> : vector<16x128xf32>
    %44 = tpu.matmul %42, %43, %cst_34 {dimension_numbers = #tpu.dot_dimension_numbers<[1], [0], [0], [1], [0, 0, 1, 1], [], []>} : vector<16x64xbf16>, vector<64x128xbf16>, vector<16x128xf32> -> vector<16x128xf32>
    %c0_35 = arith.constant 0 : index
    %c0_36 = arith.constant 0 : index
    %45 = vector.load %arg15[%c0_35, %c0_36] : memref<1x128xf32, #tpu.memory_space<vmem>>, vector<1x128xf32>
    %46 = vector.broadcast %45 : vector<1x128xf32> to vector<16x128xf32>
    %47 = arith.addf %44, %46 : vector<16x128xf32>
    %48 = math.tanh %47 : vector<16x128xf32>
    %49 = arith.truncf %48 : vector<16x128xf32> to vector<16x128xbf16>
    %c0_37 = arith.constant 0 : index
    %c0_38 = arith.constant 0 : index
    %50 = vector.load %arg16[%c0_37, %c0_38] : memref<128x784xbf16, #tpu.memory_space<vmem>>, vector<128x784xbf16>
    %cst_39 = arith.constant dense<0.000000e+00> : vector<16x784xf32>
    %51 = tpu.matmul %49, %50, %cst_39 {dimension_numbers = #tpu.dot_dimension_numbers<[1], [0], [0], [1], [0, 0, 1, 1], [], []>} : vector<16x128xbf16>, vector<128x784xbf16>, vector<16x784xf32> -> vector<16x784xf32>
    %c0_40 = arith.constant 0 : index
    %c0_41 = arith.constant 0 : index
    %52 = vector.load %arg17[%c0_40, %c0_41] : memref<1x784xf32, #tpu.memory_space<vmem>>, vector<1x784xf32>
    %53 = vector.broadcast %52 : vector<1x784xf32> to vector<16x784xf32>
    %54 = arith.addf %51, %53 : vector<16x784xf32>
    %55 = arith.negf %54 : vector<16x784xf32>
    %56 = math.exp %55 : vector<16x784xf32>
    %cst_42 = arith.constant 1.000000e+00 : f32
    %57 = vector.broadcast %cst_42 : f32 to vector<16x784xf32>
    %58 = arith.addf %57, %56 : vector<16x784xf32>
    %59 = arith.divf %57, %58 : vector<16x784xf32>
    %60 = arith.truncf %59 : vector<16x784xf32> to vector<16x784xbf16>
    %c0_43 = arith.constant 0 : index
    %c0_44 = arith.constant 0 : index
    %61 = vector.load %arg19[%c0_43, %c0_44] : memref<16x784xbf16, #tpu.memory_space<vmem>>, vector<16x784xbf16>
    tpu.vector_store %arg19[%c0_43, %c0_44], %60 {strides = array<i32>} : memref<16x784xbf16, #tpu.memory_space<vmem>>, vector<16x784xbf16>,
    return
  }
  func.func @transform_0(%arg0: i32) -> (i32, i32) {
    %c0_i32 = arith.constant 0 : i32
    %c0_i32_0 = arith.constant 0 : i32
    return %arg0, %c0_i32 : i32, i32
  }
  func.func @transform_1(%arg0: i32) -> (i32, i32) {
    %c0_i32 = arith.constant 0 : i32
    %c0_i32_0 = arith.constant 0 : i32
    %c0_i32_1 = arith.constant 0 : i32
    return %c0_i32, %c0_i32_0 : i32, i32
  }
  func.func @transform_2(%arg0: i32) -> (i32, i32) {
    %c0_i32 = arith.constant 0 : i32
    %c0_i32_0 = arith.constant 0 : i32
    %c0_i32_1 = arith.constant 0 : i32
    return %c0_i32, %c0_i32_0 : i32, i32
  }
  func.func @transform_3(%arg0: i32) -> (i32, i32) {
    %c0_i32 = arith.constant 0 : i32
    %c0_i32_0 = arith.constant 0 : i32
    %c0_i32_1 = arith.constant 0 : i32
    return %c0_i32, %c0_i32_0 : i32, i32
  }
  func.func @transform_4(%arg0: i32) -> (i32, i32) {
    %c0_i32 = arith.constant 0 : i32
    %c0_i32_0 = arith.constant 0 : i32
    %c0_i32_1 = arith.constant 0 : i32
    return %c0_i32, %c0_i32_0 : i32, i32
  }
  func.func @transform_5(%arg0: i32) -> (i32, i32) {
    %c0_i32 = arith.constant 0 : i32
    %c0_i32_0 = arith.constant 0 : i32
    %c0_i32_1 = arith.constant 0 : i32
    return %c0_i32, %c0_i32_0 : i32, i32
  }
  func.func @transform_6(%arg0: i32) -> (i32, i32) {
    %c0_i32 = arith.constant 0 : i32
    %c0_i32_0 = arith.constant 0 : i32
    %c0_i32_1 = arith.constant 0 : i32
    return %c0_i32, %c0_i32_0 : i32, i32
  }
  func.func @transform_7(%arg0: i32) -> (i32, i32) {
    %c0_i32 = arith.constant 0 : i32
    %c0_i32_0 = arith.constant 0 : i32
    %c0_i32_1 = arith.constant 0 : i32
    return %c0_i32, %c0_i32_0 : i32, i32
  }
  func.func @transform_8(%arg0: i32) -> (i32, i32) {
    %c0_i32 = arith.constant 0 : i32
    %c0_i32_0 = arith.constant 0 : i32
    %c0_i32_1 = arith.constant 0 : i32
    return %c0_i32, %c0_i32_0 : i32, i32
  }
  func.func @transform_9(%arg0: i32) -> (i32, i32) {
    %c0_i32 = arith.constant 0 : i32
    %c0_i32_0 = arith.constant 0 : i32
    %c0_i32_1 = arith.constant 0 : i32
    return %c0_i32, %c0_i32_0 : i32, i32
  }
  func.func @transform_10(%arg0: i32) -> (i32, i32) {
    %c0_i32 = arith.constant 0 : i32
    %c0_i32_0 = arith.constant 0 : i32
    %c0_i32_1 = arith.constant 0 : i32
    return %c0_i32, %c0_i32_0 : i32, i32
  }
  func.func @transform_11(%arg0: i32) -> (i32, i32) {
    %c0_i32 = arith.constant 0 : i32
    %c0_i32_0 = arith.constant 0 : i32
    %c0_i32_1 = arith.constant 0 : i32
    return %c0_i32, %c0_i32_0 : i32, i32
  }
  func.func @transform_12(%arg0: i32) -> (i32, i32) {
    %c0_i32 = arith.constant 0 : i32
    %c0_i32_0 = arith.constant 0 : i32
    %c0_i32_1 = arith.constant 0 : i32
    return %c0_i32, %c0_i32_0 : i32, i32
  }
  func.func @transform_13(%arg0: i32) -> (i32, i32) {
    %c0_i32 = arith.constant 0 : i32
    %c0_i32_0 = arith.constant 0 : i32
    %c0_i32_1 = arith.constant 0 : i32
    return %c0_i32, %c0_i32_0 : i32, i32
  }
  func.func @transform_14(%arg0: i32) -> (i32, i32) {
    %c0_i32 = arith.constant 0 : i32
    %c0_i32_0 = arith.constant 0 : i32
    %c0_i32_1 = arith.constant 0 : i32
    return %c0_i32, %c0_i32_0 : i32, i32
  }
  func.func @transform_15(%arg0: i32) -> (i32, i32) {
    %c0_i32 = arith.constant 0 : i32
    %c0_i32_0 = arith.constant 0 : i32
    %c0_i32_1 = arith.constant 0 : i32
    return %c0_i32, %c0_i32_0 : i32, i32
  }
  func.func @transform_16(%arg0: i32) -> (i32, i32) {
    %c0_i32 = arith.constant 0 : i32
    %c0_i32_0 = arith.constant 0 : i32
    %c0_i32_1 = arith.constant 0 : i32
    return %c0_i32, %c0_i32_0 : i32, i32
  }
  func.func @transform_17(%arg0: i32) -> (i32, i32) {
    %c0_i32 = arith.constant 0 : i32
    %c0_i32_0 = arith.constant 0 : i32
    return %arg0, %c0_i32 : i32, i32
  }
  func.func @transform_18(%arg0: i32) -> (i32, i32) {
    %c0_i32 = arith.constant 0 : i32
    %c0_i32_0 = arith.constant 0 : i32
    return %arg0, %c0_i32 : i32, i32
  }
}

</mosaic_0001>

<llo_original>
// kernel: tpu_custom_call.1
$region0: #{tpu_custom_call.1}
  #allocation0 [shape = 'u32[]', space=smem, size = 0x4, offset = 0x4, fixed_abs, tag = 'smem constant byte address 0x4 - core index']
  #allocation1 [shape = 'u32[144,128]{1,0:T(1,128)}', space=vmem, size = 0x12000, scoped, tag = 'internal scratch']
  %s0 = inlined_call_operand.vmem [shape: bf16[32,784], index: 0, kind: input, shape index: {}]
  %s1 = inlined_call_operand.vmem [shape: bf16[784,128], index: 1, kind: input, shape index: {}]
  %s2 = inlined_call_operand.vmem [shape: f32[1,128], index: 2, kind: input, shape index: {}]
  %s3 = inlined_call_operand.vmem [shape: bf16[128,64], index: 3, kind: input, shape index: {}]
  %s4 = inlined_call_operand.vmem [shape: f32[1,64], index: 4, kind: input, shape index: {}]
  %s5 = inlined_call_operand.vmem [shape: bf16[64,12], index: 5, kind: input, shape index: {}]
  %s6 = inlined_call_operand.vmem [shape: f32[1,12], index: 6, kind: input, shape index: {}]
  %s7 = inlined_call_operand.vmem [shape: bf16[12,3], index: 7, kind: input, shape index: {}]
  %s8 = inlined_call_operand.vmem [shape: f32[1,3], index: 8, kind: input, shape index: {}]
  %s9 = inlined_call_operand.vmem [shape: bf16[3,12], index: 9, kind: input, shape index: {}]
  %s10 = inlined_call_operand.vmem [shape: f32[1,12], index: 10, kind: input, shape index: {}]
  %s11 = inlined_call_operand.vmem [shape: bf16[12,64], index: 11, kind: input, shape index: {}]
  %s12 = inlined_call_operand.vmem [shape: f32[1,64], index: 12, kind: input, shape index: {}]
  %s13 = inlined_call_operand.vmem [shape: bf16[64,128], index: 13, kind: input, shape index: {}]
  %s14 = inlined_call_operand.vmem [shape: f32[1,128], index: 14, kind: input, shape index: {}]
  %s15 = inlined_call_operand.vmem [shape: bf16[128,784], index: 15, kind: input, shape index: {}]
  %s16 = inlined_call_operand.vmem [shape: f32[1,784], index: 16, kind: input, shape index: {}]
  %s17 = inlined_call_operand.vmem [shape: f32[32,3], index: 17, kind: output, shape index: {0}]
  %s18 = inlined_call_operand.hbm [shape: bf16[32,784], index: 18, kind: output, shape index: {1}]
  %19 = xla_tuple %s17, %s18
  %s20 = sld [smem:[#allocation0]]
  $region109: #{tpu_custom_call.1} parent=0
    _
  %s22 = ssub.s32 1, %s20
  %s23 = scalar_select 0, %s22, %s20
  $region1: #{tpu_custom_call.1} parent=0
    #allocation2 [shape = 'u8[57344]{0}', space=vmem, size = 0xe000, scoped, tag = 'output window, operand 1']
    #allocation3 [shape = 's32[2]{0}', space=sflag, size = 0x8, scoped, tag = 'scoped memory for tpu_custom_call.1']
    %24 = vsyncpa [#allocation3], 0
    %s25 = scalar_lea.sflag [#allocation3], 1
    %26 = vsyncpa %s25, 0
    loop: start=0, step=1, limit=4
    $region2: #{tpu_custom_call.1} parent=1 // loop_pre_header
      _
    $region3: #{tpu_custom_call.1} parent=1 // loop_header
      %s28 = sphi 0, %s32
      %p29 = scmp.ge.s32.totalorder %s28, 4
      %s38 = sphi 0, %s40
      %s41 = sphi 0, %s38
      %s42 = sphi 0, %s41
      %s58 = sphi 0, %s42
      %s62 = sphi 0, %s62
      %s64 = sphi 0, %s62
      %s65 = sphi 0, %s64
      %s79 = sphi 0, %s65
      %s83 = sphi 0, %s83
      %s85 = sphi 0, %s83
      %s86 = sphi 0, %s85
      %s100 = sphi 0, %s86
      %s104 = sphi 0, %s104
      %s106 = sphi 0, %s104
      %s107 = sphi 0, %s106
      %s121 = sphi 0, %s107
      %s125 = sphi 0, %s125
      %s127 = sphi 0, %s125
      %s128 = sphi 0, %s127
      %s142 = sphi 0, %s128
      %s146 = sphi 0, %s146
      %s148 = sphi 0, %s146
      %s149 = sphi 0, %s148
      %s163 = sphi 0, %s149
      %s167 = sphi 0, %s167
      %s169 = sphi 0, %s167
      %s170 = sphi 0, %s169
      %s184 = sphi 0, %s170
      %s188 = sphi 0, %s188
      %s190 = sphi 0, %s188
      %s191 = sphi 0, %s190
      %s205 = sphi 0, %s191
      %s209 = sphi 0, %s209
      %s211 = sphi 0, %s209
      %s212 = sphi 0, %s211
      %s226 = sphi 0, %s212
      %s230 = sphi 0, %s230
      %s232 = sphi 0, %s230
      %s233 = sphi 0, %s232
      %s247 = sphi 0, %s233
      %s251 = sphi 0, %s251
      %s253 = sphi 0, %s251
      %s254 = sphi 0, %s253
      %s268 = sphi 0, %s254
      %s272 = sphi 0, %s272
      %s274 = sphi 0, %s272
      %s275 = sphi 0, %s274
      %s289 = sphi 0, %s275
      %s293 = sphi 0, %s293
      %s295 = sphi 0, %s293
      %s296 = sphi 0, %s295
      %s310 = sphi 0, %s296
      %s314 = sphi 0, %s314
      %s316 = sphi 0, %s314
      %s317 = sphi 0, %s316
      %s331 = sphi 0, %s317
      %s335 = sphi 0, %s335
      %s337 = sphi 0, %s335
      %s338 = sphi 0, %s337
      %s352 = sphi 0, %s338
      %s356 = sphi 0, %s356
      %s358 = sphi 0, %s356
      %s359 = sphi 0, %s358
      %s373 = sphi 0, %s359
      %s377 = sphi 0, %s377
      %s379 = sphi 0, %s377
      %s380 = sphi 0, %s379
      %s394 = sphi 0, %s380
      %s400 = sphi 0, %s402
      %s403 = sphi 0, %s400
      %s404 = sphi 0, %s403
      %s420 = sphi 0, %s404
      %s426 = sphi 0, %s428
      %s429 = sphi 0, %s426
      %s430 = sphi 0, %s429
      %s446 = sphi 0, %s430
    $region4: #{tpu_custom_call.1} parent=1 // loop_header_branch
      %31 = sbr.rel (%p29) target = $region8
    $region5: #{tpu_custom_call.1} parent=1 // loop_body
      %s33 = ssub.s32 %s28, 1
      %s34 = ssub.s32 %s28, 2
      %s35 = sadd.s32 %s28, 1
      %s36 = ssub.s32 %s28, %s35
      %p37 = scmp.eq.s32.totalorder %s36, 0
      %s39 = sadd.s32 %s38, 1
      %s40 = scalar_select %p37, %s38, %s39
      %p43 = pneg %p37
      %p44 = scmp.eq.s32.totalorder %s28, 1
      %p45 = por %p43, %p44
      %p46 = scmp.ne.s32.totalorder %s38, %s41
      %p47 = scmp.eq.s32.totalorder %s28, 0
      %p48 = por %p46, %p47
      %p49 = scmp.ne.s32.totalorder %s38, %s41
      %p50 = scmp.eq.s32.totalorder %s33, 1
      %p51 = por %p49, %p50
      %p52 = scmp.ne.s32.totalorder %s41, %s42
      %p53 = scmp.eq.s32.totalorder %s33, 0
      %p54 = por %p52, %p53
      %p55 = scmp.ne.s32.totalorder %s41, %s42
      %p56 = scmp.eq.s32.totalorder %s34, 1
      %p57 = por %p55, %p56
      %p59 = scmp.ne.s32.totalorder %s42, %s58
      %p60 = scmp.eq.s32.totalorder %s34, 0
      %p61 = por %p59, %p60
      %s63 = sadd.s32 %s62, 1
      %p66 = scmp.eq.s32.totalorder %s28, 1
      %p67 = scmp.ne.s32.totalorder %s62, %s64
      %p68 = scmp.eq.s32.totalorder %s28, 0
      %p69 = por %p67, %p68
      %p70 = scmp.ne.s32.totalorder %s62, %s64
      %p71 = scmp.eq.s32.totalorder %s33, 1
      %p72 = por %p70, %p71
      %p73 = scmp.ne.s32.totalorder %s64, %s65
      %p74 = scmp.eq.s32.totalorder %s33, 0
      %p75 = por %p73, %p74
      %p76 = scmp.ne.s32.totalorder %s64, %s65
      %p77 = scmp.eq.s32.totalorder %s34, 1
      %p78 = por %p76, %p77
      %p80 = scmp.ne.s32.totalorder %s65, %s79
      %p81 = scmp.eq.s32.totalorder %s34, 0
      %p82 = por %p80, %p81
      %s84 = sadd.s32 %s83, 1
      %p87 = scmp.eq.s32.totalorder %s28, 1
      %p88 = scmp.ne.s32.totalorder %s83, %s85
      %p89 = scmp.eq.s32.totalorder %s28, 0
      %p90 = por %p88, %p89
      %p91 = scmp.ne.s32.totalorder %s83, %s85
      %p92 = scmp.eq.s32.totalorder %s33, 1
      %p93 = por %p91, %p92
      %p94 = scmp.ne.s32.totalorder %s85, %s86
      %p95 = scmp.eq.s32.totalorder %s33, 0
      %p96 = por %p94, %p95
      %p97 = scmp.ne.s32.totalorder %s85, %s86
      %p98 = scmp.eq.s32.totalorder %s34, 1
      %p99 = por %p97, %p98
      %p101 = scmp.ne.s32.totalorder %s86, %s100
      %p102 = scmp.eq.s32.totalorder %s34, 0
      %p103 = por %p101, %p102
      %s105 = sadd.s32 %s104, 1
      %p108 = scmp.eq.s32.totalorder %s28, 1
      %p109 = scmp.ne.s32.totalorder %s104, %s106
      %p110 = scmp.eq.s32.totalorder %s28, 0
      %p111 = por %p109, %p110
      %p112 = scmp.ne.s32.totalorder %s104, %s106
      %p113 = scmp.eq.s32.totalorder %s33, 1
      %p114 = por %p112, %p113
      %p115 = scmp.ne.s32.totalorder %s106, %s107
      %p116 = scmp.eq.s32.totalorder %s33, 0
      %p117 = por %p115, %p116
      %p118 = scmp.ne.s32.totalorder %s106, %s107
      %p119 = scmp.eq.s32.totalorder %s34, 1
      %p120 = por %p118, %p119
      %p122 = scmp.ne.s32.totalorder %s107, %s121
      %p123 = scmp.eq.s32.totalorder %s34, 0
      %p124 = por %p122, %p123
      %s126 = sadd.s32 %s125, 1
      %p129 = scmp.eq.s32.totalorder %s28, 1
      %p130 = scmp.ne.s32.totalorder %s125, %s127
      %p131 = scmp.eq.s32.totalorder %s28, 0
      %p132 = por %p130, %p131
      %p133 = scmp.ne.s32.totalorder %s125, %s127
      %p134 = scmp.eq.s32.totalorder %s33, 1
      %p135 = por %p133, %p134
      %p136 = scmp.ne.s32.totalorder %s127, %s128
      %p137 = scmp.eq.s32.totalorder %s33, 0
      %p138 = por %p136, %p137
      %p139 = scmp.ne.s32.totalorder %s127, %s128
      %p140 = scmp.eq.s32.totalorder %s34, 1
      %p141 = por %p139, %p140
      %p143 = scmp.ne.s32.totalorder %s128, %s142
      %p144 = scmp.eq.s32.totalorder %s34, 0
      %p145 = por %p143, %p144
      %s147 = sadd.s32 %s146, 1
      %p150 = scmp.eq.s32.totalorder %s28, 1
      %p151 = scmp.ne.s32.totalorder %s146, %s148
      %p152 = scmp.eq.s32.totalorder %s28, 0
      %p153 = por %p151, %p152
      %p154 = scmp.ne.s32.totalorder %s146, %s148
      %p155 = scmp.eq.s32.totalorder %s33, 1
      %p156 = por %p154, %p155
      %p157 = scmp.ne.s32.totalorder %s148, %s149
      %p158 = scmp.eq.s32.totalorder %s33, 0
      %p159 = por %p157, %p158
      %p160 = scmp.ne.s32.totalorder %s148, %s149
      %p161 = scmp.eq.s32.totalorder %s34, 1
      %p162 = por %p160, %p161
      %p164 = scmp.ne.s32.totalorder %s149, %s163
      %p165 = scmp.eq.s32.totalorder %s34, 0
      %p166 = por %p164, %p165
      %s168 = sadd.s32 %s167, 1
      %p171 = scmp.eq.s32.totalorder %s28, 1
      %p172 = scmp.ne.s32.totalorder %s167, %s169
      %p173 = scmp.eq.s32.totalorder %s28, 0
      %p174 = por %p172, %p173
      %p175 = scmp.ne.s32.totalorder %s167, %s169
      %p176 = scmp.eq.s32.totalorder %s33, 1
      %p177 = por %p175, %p176
      %p178 = scmp.ne.s32.totalorder %s169, %s170
      %p179 = scmp.eq.s32.totalorder %s33, 0
      %p180 = por %p178, %p179
      %p181 = scmp.ne.s32.totalorder %s169, %s170
      %p182 = scmp.eq.s32.totalorder %s34, 1
      %p183 = por %p181, %p182
      %p185 = scmp.ne.s32.totalorder %s170, %s184
      %p186 = scmp.eq.s32.totalorder %s34, 0
      %p187 = por %p185, %p186
      %s189 = sadd.s32 %s188, 1
      %p192 = scmp.eq.s32.totalorder %s28, 1
      %p193 = scmp.ne.s32.totalorder %s188, %s190
      %p194 = scmp.eq.s32.totalorder %s28, 0
      %p195 = por %p193, %p194
      %p196 = scmp.ne.s32.totalorder %s188, %s190
      %p197 = scmp.eq.s32.totalorder %s33, 1
      %p198 = por %p196, %p197
      %p199 = scmp.ne.s32.totalorder %s190, %s191
      %p200 = scmp.eq.s32.totalorder %s33, 0
      %p201 = por %p199, %p200
      %p202 = scmp.ne.s32.totalorder %s190, %s191
      %p203 = scmp.eq.s32.totalorder %s34, 1
      %p204 = por %p202, %p203
      %p206 = scmp.ne.s32.totalorder %s191, %s205
      %p207 = scmp.eq.s32.totalorder %s34, 0
      %p208 = por %p206, %p207
      %s210 = sadd.s32 %s209, 1
      %p213 = scmp.eq.s32.totalorder %s28, 1
      %p214 = scmp.ne.s32.totalorder %s209, %s211
      %p215 = scmp.eq.s32.totalorder %s28, 0
      %p216 = por %p214, %p215
      %p217 = scmp.ne.s32.totalorder %s209, %s211
      %p218 = scmp.eq.s32.totalorder %s33, 1
      %p219 = por %p217, %p218
      %p220 = scmp.ne.s32.totalorder %s211, %s212
      %p221 = scmp.eq.s32.totalorder %s33, 0
      %p222 = por %p220, %p221
      %p223 = scmp.ne.s32.totalorder %s211, %s212
      %p224 = scmp.eq.s32.totalorder %s34, 1
      %p225 = por %p223, %p224
      %p227 = scmp.ne.s32.totalorder %s212, %s226
      %p228 = scmp.eq.s32.totalorder %s34, 0
      %p229 = por %p227, %p228
      %s231 = sadd.s32 %s230, 1
      %p234 = scmp.eq.s32.totalorder %s28, 1
      %p235 = scmp.ne.s32.totalorder %s230, %s232
      %p236 = scmp.eq.s32.totalorder %s28, 0
      %p237 = por %p235, %p236
      %p238 = scmp.ne.s32.totalorder %s230, %s232
      %p239 = scmp.eq.s32.totalorder %s33, 1
      %p240 = por %p238, %p239
      %p241 = scmp.ne.s32.totalorder %s232, %s233
      %p242 = scmp.eq.s32.totalorder %s33, 0
      %p243 = por %p241, %p242
      %p244 = scmp.ne.s32.totalorder %s232, %s233
      %p245 = scmp.eq.s32.totalorder %s34, 1
      %p246 = por %p244, %p245
      %p248 = scmp.ne.s32.totalorder %s233, %s247
      %p249 = scmp.eq.s32.totalorder %s34, 0
      %p250 = por %p248, %p249
      %s252 = sadd.s32 %s251, 1
      %p255 = scmp.eq.s32.totalorder %s28, 1
      %p256 = scmp.ne.s32.totalorder %s251, %s253
      %p257 = scmp.eq.s32.totalorder %s28, 0
      %p258 = por %p256, %p257
      %p259 = scmp.ne.s32.totalorder %s251, %s253
      %p260 = scmp.eq.s32.totalorder %s33, 1
      %p261 = por %p259, %p260
      %p262 = scmp.ne.s32.totalorder %s253, %s254
      %p263 = scmp.eq.s32.totalorder %s33, 0
      %p264 = por %p262, %p263
      %p265 = scmp.ne.s32.totalorder %s253, %s254
      %p266 = scmp.eq.s32.totalorder %s34, 1
      %p267 = por %p265, %p266
      %p269 = scmp.ne.s32.totalorder %s254, %s268
      %p270 = scmp.eq.s32.totalorder %s34, 0
      %p271 = por %p269, %p270
      %s273 = sadd.s32 %s272, 1
      %p276 = scmp.eq.s32.totalorder %s28, 1
      %p277 = scmp.ne.s32.totalorder %s272, %s274
      %p278 = scmp.eq.s32.totalorder %s28, 0
      %p279 = por %p277, %p278
      %p280 = scmp.ne.s32.totalorder %s272, %s274
      %p281 = scmp.eq.s32.totalorder %s33, 1
      %p282 = por %p280, %p281
      %p283 = scmp.ne.s32.totalorder %s274, %s275
      %p284 = scmp.eq.s32.totalorder %s33, 0
      %p285 = por %p283, %p284
      %p286 = scmp.ne.s32.totalorder %s274, %s275
      %p287 = scmp.eq.s32.totalorder %s34, 1
      %p288 = por %p286, %p287
      %p290 = scmp.ne.s32.totalorder %s275, %s289
      %p291 = scmp.eq.s32.totalorder %s34, 0
      %p292 = por %p290, %p291
      %s294 = sadd.s32 %s293, 1
      %p297 = scmp.eq.s32.totalorder %s28, 1
      %p298 = scmp.ne.s32.totalorder %s293, %s295
      %p299 = scmp.eq.s32.totalorder %s28, 0
      %p300 = por %p298, %p299
      %p301 = scmp.ne.s32.totalorder %s293, %s295
      %p302 = scmp.eq.s32.totalorder %s33, 1
      %p303 = por %p301, %p302
      %p304 = scmp.ne.s32.totalorder %s295, %s296
      %p305 = scmp.eq.s32.totalorder %s33, 0
      %p306 = por %p304, %p305
      %p307 = scmp.ne.s32.totalorder %s295, %s296
      %p308 = scmp.eq.s32.totalorder %s34, 1
      %p309 = por %p307, %p308
      %p311 = scmp.ne.s32.totalorder %s296, %s310
      %p312 = scmp.eq.s32.totalorder %s34, 0
      %p313 = por %p311, %p312
      %s315 = sadd.s32 %s314, 1
      %p318 = scmp.eq.s32.totalorder %s28, 1
      %p319 = scmp.ne.s32.totalorder %s314, %s316
      %p320 = scmp.eq.s32.totalorder %s28, 0
      %p321 = por %p319, %p320
      %p322 = scmp.ne.s32.totalorder %s314, %s316
      %p323 = scmp.eq.s32.totalorder %s33, 1
      %p324 = por %p322, %p323
      %p325 = scmp.ne.s32.totalorder %s316, %s317
      %p326 = scmp.eq.s32.totalorder %s33, 0
      %p327 = por %p325, %p326
      %p328 = scmp.ne.s32.totalorder %s316, %s317
      %p329 = scmp.eq.s32.totalorder %s34, 1
      %p330 = por %p328, %p329
      %p332 = scmp.ne.s32.totalorder %s317, %s331
      %p333 = scmp.eq.s32.totalorder %s34, 0
      %p334 = por %p332, %p333
      %s336 = sadd.s32 %s335, 1
      %p339 = scmp.eq.s32.totalorder %s28, 1
      %p340 = scmp.ne.s32.totalorder %s335, %s337
      %p341 = scmp.eq.s32.totalorder %s28, 0
      %p342 = por %p340, %p341
      %p343 = scmp.ne.s32.totalorder %s335, %s337
      %p344 = scmp.eq.s32.totalorder %s33, 1
      %p345 = por %p343, %p344
      %p346 = scmp.ne.s32.totalorder %s337, %s338
      %p347 = scmp.eq.s32.totalorder %s33, 0
      %p348 = por %p346, %p347
      %p349 = scmp.ne.s32.totalorder %s337, %s338
      %p350 = scmp.eq.s32.totalorder %s34, 1
      %p351 = por %p349, %p350
      %p353 = scmp.ne.s32.totalorder %s338, %s352
      %p354 = scmp.eq.s32.totalorder %s34, 0
      %p355 = por %p353, %p354
      %s357 = sadd.s32 %s356, 1
      %p360 = scmp.eq.s32.totalorder %s28, 1
      %p361 = scmp.ne.s32.totalorder %s356, %s358
      %p362 = scmp.eq.s32.totalorder %s28, 0
      %p363 = por %p361, %p362
      %p364 = scmp.ne.s32.totalorder %s356, %s358
      %p365 = scmp.eq.s32.totalorder %s33, 1
      %p366 = por %p364, %p365
      %p367 = scmp.ne.s32.totalorder %s358, %s359
      %p368 = scmp.eq.s32.totalorder %s33, 0
      %p369 = por %p367, %p368
      %p370 = scmp.ne.s32.totalorder %s358, %s359
      %p371 = scmp.eq.s32.totalorder %s34, 1
      %p372 = por %p370, %p371
      %p374 = scmp.ne.s32.totalorder %s359, %s373
      %p375 = scmp.eq.s32.totalorder %s34, 0
      %p376 = por %p374, %p375
      %s378 = sadd.s32 %s377, 1
      %p381 = scmp.eq.s32.totalorder %s28, 1
      %p382 = scmp.ne.s32.totalorder %s377, %s379
      %p383 = scmp.eq.s32.totalorder %s28, 0
      %p384 = por %p382, %p383
      %p385 = scmp.ne.s32.totalorder %s377, %s379
      %p386 = scmp.eq.s32.totalorder %s33, 1
      %p387 = por %p385, %p386
      %p388 = scmp.ne.s32.totalorder %s379, %s380
      %p389 = scmp.eq.s32.totalorder %s33, 0
      %p390 = por %p388, %p389
      %p391 = scmp.ne.s32.totalorder %s379, %s380
      %p392 = scmp.eq.s32.totalorder %s34, 1
      %p393 = por %p391, %p392
      %p395 = scmp.ne.s32.totalorder %s380, %s394
      %p396 = scmp.eq.s32.totalorder %s34, 0
      %p397 = por %p395, %p396
      %s398 = ssub.s32 %s28, %s35
      %p399 = scmp.eq.s32.totalorder %s398, 0
      %s401 = sadd.s32 %s400, 1
      %s402 = scalar_select %p399, %s400, %s401
      %p405 = pneg %p399
      %p406 = scmp.eq.s32.totalorder %s28, 1
      %p407 = por %p405, %p406
      %p408 = scmp.ne.s32.totalorder %s400, %s403
      %p409 = scmp.eq.s32.totalorder %s28, 0
      %p410 = por %p408, %p409
      %p411 = scmp.ne.s32.totalorder %s400, %s403
      %p412 = scmp.eq.s32.totalorder %s33, 1
      %p413 = por %p411, %p412
      %p414 = scmp.ne.s32.totalorder %s403, %s404
      %p415 = scmp.eq.s32.totalorder %s33, 0
      %p416 = por %p414, %p415
      %p417 = scmp.ne.s32.totalorder %s403, %s404
      %p418 = scmp.eq.s32.totalorder %s34, 1
      %p419 = por %p417, %p418
      %p421 = scmp.ne.s32.totalorder %s404, %s420
      %p422 = scmp.eq.s32.totalorder %s34, 0
      %p423 = por %p421, %p422
      %s424 = ssub.s32 %s28, %s35
      %p425 = scmp.eq.s32.totalorder %s424, 0
      %s427 = sadd.s32 %s426, 1
      %s428 = scalar_select %p425, %s426, %s427
      %p431 = pneg %p425
      %p432 = scmp.eq.s32.totalorder %s28, 1
      %p433 = por %p431, %p432
      %p434 = scmp.ne.s32.totalorder %s426, %s429
      %p435 = scmp.eq.s32.totalorder %s28, 0
      %p436 = por %p434, %p435
      %p437 = scmp.ne.s32.totalorder %s426, %s429
      %p438 = scmp.eq.s32.totalorder %s33, 1
      %p439 = por %p437, %p438
      %p440 = scmp.ne.s32.totalorder %s429, %s430
      %p441 = scmp.eq.s32.totalorder %s33, 0
      %p442 = por %p440, %p441
      %p443 = scmp.ne.s32.totalorder %s429, %s430
      %p444 = scmp.eq.s32.totalorder %s34, 1
      %p445 = por %p443, %p444
      %p447 = scmp.ne.s32.totalorder %s430, %s446
      %p448 = scmp.eq.s32.totalorder %s34, 0
      %p449 = por %p447, %p448
      %p450 = scmp.le.s32.totalorder 1, %s28
      %p451 = scmp.lt.s32.totalorder %s28, 3
      %p452 = pnand %p450, %p451
      %p453 = pneg %p452
      // Predicated region
      $region9: #{tpu_custom_call.1} parent=5 // pred_check
        _
      $region10: #{tpu_custom_call.1} parent=5 // pred_check_branch
        %455 = sbr.rel (%p452) target = $region12
      $region11: #{tpu_custom_call.1} parent=5 // pred_region
        %s456 = ssub.s32 %s28, 1
        // Predicated region
        $region13: #{tpu_custom_call.1} parent=11 // pred_check
          %p457 = pneg %p75
        $region14: #{tpu_custom_call.1} parent=11 // pred_check_branch
          %459 = sbr.rel (%p457) target = $region16
        $region15: #{tpu_custom_call.1} parent=11 // pred_region
          _
        $region16: #{tpu_custom_call.1} parent=11 // pred_fallthru
          _
        // Predicated region
        $region17: #{tpu_custom_call.1} parent=11 // pred_check
          %p460 = pneg %p96
        $region18: #{tpu_custom_call.1} parent=11 // pred_check_branch
          %462 = sbr.rel (%p460) target = $region20
        $region19: #{tpu_custom_call.1} parent=11 // pred_region
          _
        $region20: #{tpu_custom_call.1} parent=11 // pred_fallthru
          _
        // Predicated region
        $region21: #{tpu_custom_call.1} parent=11 // pred_check
          %p463 = pneg %p117
        $region22: #{tpu_custom_call.1} parent=11 // pred_check_branch
          %465 = sbr.rel (%p463) target = $region24
        $region23: #{tpu_custom_call.1} parent=11 // pred_region
          _
        $region24: #{tpu_custom_call.1} parent=11 // pred_fallthru
          _
        // Predicated region
        $region25: #{tpu_custom_call.1} parent=11 // pred_check
          %p466 = pneg %p138
        $region26: #{tpu_custom_call.1} parent=11 // pred_check_branch
          %468 = sbr.rel (%p466) target = $region28
        $region27: #{tpu_custom_call.1} parent=11 // pred_region
          _
        $region28: #{tpu_custom_call.1} parent=11 // pred_fallthru
          _
        // Predicated region
        $region29: #{tpu_custom_call.1} parent=11 // pred_check
          %p469 = pneg %p159
        $region30: #{tpu_custom_call.1} parent=11 // pred_check_branch
          %471 = sbr.rel (%p469) target = $region32
        $region31: #{tpu_custom_call.1} parent=11 // pred_region
          _
        $region32: #{tpu_custom_call.1} parent=11 // pred_fallthru
          _
        // Predicated region
        $region33: #{tpu_custom_call.1} parent=11 // pred_check
          %p472 = pneg %p180
        $region34: #{tpu_custom_call.1} parent=11 // pred_check_branch
          %474 = sbr.rel (%p472) target = $region36
        $region35: #{tpu_custom_call.1} parent=11 // pred_region
          _
        $region36: #{tpu_custom_call.1} parent=11 // pred_fallthru
          _
        // Predicated region
        $region37: #{tpu_custom_call.1} parent=11 // pred_check
          %p475 = pneg %p201
        $region38: #{tpu_custom_call.1} parent=11 // pred_check_branch
          %477 = sbr.rel (%p475) target = $region40
        $region39: #{tpu_custom_call.1} parent=11 // pred_region
          _
        $region40: #{tpu_custom_call.1} parent=11 // pred_fallthru
          _
        // Predicated region
        $region41: #{tpu_custom_call.1} parent=11 // pred_check
          %p478 = pneg %p222
        $region42: #{tpu_custom_call.1} parent=11 // pred_check_branch
          %480 = sbr.rel (%p478) target = $region44
        $region43: #{tpu_custom_call.1} parent=11 // pred_region
          _
        $region44: #{tpu_custom_call.1} parent=11 // pred_fallthru
          _
        // Predicated region
        $region45: #{tpu_custom_call.1} parent=11 // pred_check
          %p481 = pneg %p243
        $region46: #{tpu_custom_call.1} parent=11 // pred_check_branch
          %483 = sbr.rel (%p481) target = $region48
        $region47: #{tpu_custom_call.1} parent=11 // pred_region
          _
        $region48: #{tpu_custom_call.1} parent=11 // pred_fallthru
          _
        // Predicated region
        $region49: #{tpu_custom_call.1} parent=11 // pred_check
          %p484 = pneg %p264
        $region50: #{tpu_custom_call.1} parent=11 // pred_check_branch
          %486 = sbr.rel (%p484) target = $region52
        $region51: #{tpu_custom_call.1} parent=11 // pred_region
          _
        $region52: #{tpu_custom_call.1} parent=11 // pred_fallthru
          _
        // Predicated region
        $region53: #{tpu_custom_call.1} parent=11 // pred_check
          %p487 = pneg %p285
        $region54: #{tpu_custom_call.1} parent=11 // pred_check_branch
          %489 = sbr.rel (%p487) target = $region56
        $region55: #{tpu_custom_call.1} parent=11 // pred_region
          _
        $region56: #{tpu_custom_call.1} parent=11 // pred_fallthru
          _
        // Predicated region
        $region57: #{tpu_custom_call.1} parent=11 // pred_check
          %p490 = pneg %p306
        $region58: #{tpu_custom_call.1} parent=11 // pred_check_branch
          %492 = sbr.rel (%p490) target = $region60
        $region59: #{tpu_custom_call.1} parent=11 // pred_region
          _
        $region60: #{tpu_custom_call.1} parent=11 // pred_fallthru
          _
        // Predicated region
        $region61: #{tpu_custom_call.1} parent=11 // pred_check
          %p493 = pneg %p327
        $region62: #{tpu_custom_call.1} parent=11 // pred_check_branch
          %495 = sbr.rel (%p493) target = $region64
        $region63: #{tpu_custom_call.1} parent=11 // pred_region
          _
        $region64: #{tpu_custom_call.1} parent=11 // pred_fallthru
          _
        // Predicated region
        $region65: #{tpu_custom_call.1} parent=11 // pred_check
          %p496 = pneg %p348
        $region66: #{tpu_custom_call.1} parent=11 // pred_check_branch
          %498 = sbr.rel (%p496) target = $region68
        $region67: #{tpu_custom_call.1} parent=11 // pred_region
          _
        $region68: #{tpu_custom_call.1} parent=11 // pred_fallthru
          _
        // Predicated region
        $region69: #{tpu_custom_call.1} parent=11 // pred_check
          %p499 = pneg %p369
        $region70: #{tpu_custom_call.1} parent=11 // pred_check_branch
          %501 = sbr.rel (%p499) target = $region72
        $region71: #{tpu_custom_call.1} parent=11 // pred_region
          _
        $region72: #{tpu_custom_call.1} parent=11 // pred_fallthru
          _
        // Predicated region
        $region73: #{tpu_custom_call.1} parent=11 // pred_check
          %p502 = pneg %p390
        $region74: #{tpu_custom_call.1} parent=11 // pred_check_branch
          %504 = sbr.rel (%p502) target = $region76
        $region75: #{tpu_custom_call.1} parent=11 // pred_region
          _
        $region76: #{tpu_custom_call.1} parent=11 // pred_fallthru
          _
      $region12: #{tpu_custom_call.1} parent=5 // pred_fallthru
        _
      %p505 = scmp.lt.s32.totalorder %s28, 2
      // Predicated region
      $region77: #{tpu_custom_call.1} parent=5 // pred_check
        %p506 = pneg %p505
      $region78: #{tpu_custom_call.1} parent=5 // pred_check_branch
        %508 = sbr.rel (%p506) target = $region80
      $region79: #{tpu_custom_call.1} parent=5 // pred_region
        // Predicated region
        $region81: #{tpu_custom_call.1} parent=79 // pred_check
          %p509 = pneg %p48
        $region82: #{tpu_custom_call.1} parent=79 // pred_check_branch
          %511 = sbr.rel (%p509) target = $region84
        $region83: #{tpu_custom_call.1} parent=79 // pred_region
          %s512 = smul.u32 2, %s28
          %p513 = scmp.lt.s32.totalorder %s512, 3
          %s514 = scalar_select %p513, %s512, 3
          %s515 = smul.addr %s514, 7
          %s516 = smul.addr %s515, 4
          %s517 = scalar_lea.vmem %s0, %s516
          %s518 = smul.u32 2, %s28
        $region84: #{tpu_custom_call.1} parent=79 // pred_fallthru
          _
      $region80: #{tpu_custom_call.1} parent=5 // pred_fallthru
        _
      %p519 = scmp.le.s32.totalorder 1, %s28
      %p520 = scmp.lt.s32.totalorder %s28, 3
      %p521 = pnand %p519, %p520
      %p522 = pneg %p521
      // Predicated region
      $region85: #{tpu_custom_call.1} parent=5 // pred_check
        _
      $region86: #{tpu_custom_call.1} parent=5 // pred_check_branch
        %524 = sbr.rel (%p521) target = $region88
      $region87: #{tpu_custom_call.1} parent=5 // pred_region
        %s525 = ssub.s32 %s28, 1
        %s526 = smul.u32 2, %s33
        %p527 = scmp.lt.s32.totalorder %s526, 3
        %s528 = scalar_select %p527, %s526, 3
        %s529 = smul.addr %s528, 7
        %s530 = smul.addr %s529, 4
        %s531 = scalar_lea.vmem %s0, %s530
        %p532 = pneg %p54
        %p533 = pneg %p51
        %p534 = pneg %p75
        %p535 = pneg %p72
        %p536 = pneg %p96
        %p537 = pneg %p93
        %p538 = pneg %p117
        %p539 = pneg %p114
        %p540 = pneg %p138
        %p541 = pneg %p135
        %p542 = pneg %p159
        %p543 = pneg %p156
        %p544 = pneg %p180
        %p545 = pneg %p177
        %p546 = pneg %p201
        %p547 = pneg %p198
        %p548 = pneg %p222
        %p549 = pneg %p219
        %p550 = pneg %p243
        %p551 = pneg %p240
        %p552 = pneg %p264
        %p553 = pneg %p261
        %p554 = pneg %p285
        %p555 = pneg %p282
        %p556 = pneg %p306
        %p557 = pneg %p303
        %p558 = pneg %p327
        %p559 = pneg %p324
        %p560 = pneg %p348
        %p561 = pneg %p345
        %p562 = pneg %p369
        %p563 = pneg %p366
        %p564 = pneg %p390
        %p565 = pneg %p387
        %p566 = pneg %p416
        %p567 = pneg %p413
        %s568 = smul.u32 2, %s33
        %p569 = scmp.lt.s32.totalorder %s568, 3
        %s570 = scalar_select %p569, %s568, 3
        %s571 = smul.addr %s570, 8
        %s572 = scalar_lea.vmem %s17, %s571
        %p573 = pneg %p442
        %p574 = pneg %p439
        %s575 = sand.u32 %s429, 1
        %s576 = scalar_lea.sflag [#allocation3], %s575
        %s577 = sand.u32 %s429, 1
        %s578 = smul.addr %s577, 56
        %s579 = scalar_lea.vmem [#allocation2], %s578
        %s580 = smul.u32 2, %s33
        %p581 = scmp.lt.s32.totalorder %s580, 3
        %s582 = scalar_select %p581, %s580, 3
        %s583 = smul.addr %s582, 7
        %s584 = smul.addr %s583, 4
        %s585 = scalar_lea.vmem %s0, %s584
        %s586 = smul.u32 2, %s33
        %s587 = smul.u32 2, %s33
        %p588 = scmp.lt.s32.totalorder %s587, 3
        %s589 = scalar_select %p588, %s587, 3
        %s590 = smul.addr %s589, 8
        %s591 = scalar_lea.vmem %s17, %s590
        %s592 = smul.u32 2, %s33
        %s593 = smul.u32 2, %s33
        %v595 = vld [vmem:[%s585] sm:$0xff]
        %v596 = vld [vmem:[%s585 + $0x8] sm:$0xff]
        %v597 = vld [vmem:[%s585 + $0x10] sm:$0xff]
        %v598 = vld [vmem:[%s585 + $0x18] sm:$0xf]
        %v599 = vld [vmem:[%s585 + $0x1c] sm:$0xff]
        %v600 = vld [vmem:[%s585 + $0x24] sm:$0xff]
        %v601 = vld [vmem:[%s585 + $0x2c] sm:$0xff]
        %v602 = vld [vmem:[%s585 + $0x34] sm:$0xf]
        %v603 = vld [vmem:[%s1] sm:$0xf]
        %v604 = vld [vmem:[%s1 + $0x4] sm:$0xf]
        %v605 = vld [vmem:[%s1 + $0x8] sm:$0xf]
        %v606 = vld [vmem:[%s1 + $0xc] sm:$0xf]
        %v607 = vld [vmem:[%s1 + $0x10] sm:$0xf]
        %v608 = vld [vmem:[%s1 + $0x14] sm:$0xf]
        %v609 = vld [vmem:[%s1 + $0x18] sm:$0xf]
        %v610 = vld [vmem:[%s1 + $0x1c] sm:$0xf]
        %v611 = vld [vmem:[%s1 + $0x20] sm:$0xf]
        %v612 = vld [vmem:[%s1 + $0x24] sm:$0xf]
        %v613 = vld [vmem:[%s1 + $0x28] sm:$0xf]
        %v614 = vld [vmem:[%s1 + $0x2c] sm:$0xf]
        %v615 = vld [vmem:[%s1 + $0x30] sm:$0xf]
        %v616 = vld [vmem:[%s1 + $0x34] sm:$0xf]
        %v617 = vld [vmem:[%s1 + $0x38] sm:$0xf]
        %v618 = vld [vmem:[%s1 + $0x3c] sm:$0xf]
        %v619 = vld [vmem:[%s1 + $0x40] sm:$0xf]
        %v620 = vld [vmem:[%s1 + $0x44] sm:$0xf]
        %v621 = vld [vmem:[%s1 + $0x48] sm:$0xf]
        %v622 = vld [vmem:[%s1 + $0x4c] sm:$0xf]
        %v623 = vld [vmem:[%s1 + $0x50] sm:$0xf]
        %v624 = vld [vmem:[%s1 + $0x54] sm:$0xf]
        %v625 = vld [vmem:[%s1 + $0x58] sm:$0xf]
        %v626 = vld [vmem:[%s1 + $0x5c] sm:$0xf]
        %v627 = vld [vmem:[%s1 + $0x60] sm:$0xf]
        %v628 = vld [vmem:[%s1 + $0x64] sm:$0xf]
        %v629 = vld [vmem:[%s1 + $0x68] sm:$0xf]
        %v630 = vld [vmem:[%s1 + $0x6c] sm:$0xf]
        %v631 = vld [vmem:[%s1 + $0x70] sm:$0xf]
        %v632 = vld [vmem:[%s1 + $0x74] sm:$0xf]
        %v633 = vld [vmem:[%s1 + $0x78] sm:$0xf]
        %v634 = vld [vmem:[%s1 + $0x7c] sm:$0xf]
        %v635 = vld [vmem:[%s1 + $0x80] sm:$0xf]
        %v636 = vld [vmem:[%s1 + $0x84] sm:$0xf]
        %v637 = vld [vmem:[%s1 + $0x88] sm:$0xf]
        %v638 = vld [vmem:[%s1 + $0x8c] sm:$0xf]
        %v639 = vld [vmem:[%s1 + $0x90] sm:$0xf]
        %v640 = vld [vmem:[%s1 + $0x94] sm:$0xf]
        %v641 = vld [vmem:[%s1 + $0x98] sm:$0xf]
        %v642 = vld [vmem:[%s1 + $0x9c] sm:$0xf]
        %v643 = vld [vmem:[%s1 + $0xa0] sm:$0xf]
        %v644 = vld [vmem:[%s1 + $0xa4] sm:$0xf]
        %v645 = vld [vmem:[%s1 + $0xa8] sm:$0xf]
        %v646 = vld [vmem:[%s1 + $0xac] sm:$0xf]
        %v647 = vld [vmem:[%s1 + $0xb0] sm:$0xf]
        %v648 = vld [vmem:[%s1 + $0xb4] sm:$0xf]
        %v649 = vld [vmem:[%s1 + $0xb8] sm:$0xf]
        %v650 = vld [vmem:[%s1 + $0xbc] sm:$0xf]
        %v651 = vld [vmem:[%s1 + $0xc0] sm:$0xf]
        %v652 = vld [vmem:[%s1 + $0xc4] sm:$0xf]
        %v653 = vld [vmem:[%s1 + $0xc8] sm:$0xf]
        %v654 = vld [vmem:[%s1 + $0xcc] sm:$0xf]
        %v655 = vld [vmem:[%s1 + $0xd0] sm:$0xf]
        %v656 = vld [vmem:[%s1 + $0xd4] sm:$0xf]
        %v657 = vld [vmem:[%s1 + $0xd8] sm:$0xf]
        %v658 = vld [vmem:[%s1 + $0xdc] sm:$0xf]
        %v659 = vld [vmem:[%s1 + $0xe0] sm:$0xf]
        %v660 = vld [vmem:[%s1 + $0xe4] sm:$0xf]
        %v661 = vld [vmem:[%s1 + $0xe8] sm:$0xf]
        %v662 = vld [vmem:[%s1 + $0xec] sm:$0xf]
        %v663 = vld [vmem:[%s1 + $0xf0] sm:$0xf]
        %v664 = vld [vmem:[%s1 + $0xf4] sm:$0xf]
        %v665 = vld [vmem:[%s1 + $0xf8] sm:$0xf]
        %v666 = vld [vmem:[%s1 + $0xfc] sm:$0xf]
        %v667 = vld [vmem:[%s1 + $0x100] sm:$0xf]
        %v668 = vld [vmem:[%s1 + $0x104] sm:$0xf]
        %v669 = vld [vmem:[%s1 + $0x108] sm:$0xf]
        %v670 = vld [vmem:[%s1 + $0x10c] sm:$0xf]
        %v671 = vld [vmem:[%s1 + $0x110] sm:$0xf]
        %v672 = vld [vmem:[%s1 + $0x114] sm:$0xf]
        %v673 = vld [vmem:[%s1 + $0x118] sm:$0xf]
        %v674 = vld [vmem:[%s1 + $0x11c] sm:$0xf]
        %v675 = vld [vmem:[%s1 + $0x120] sm:$0xf]
        %v676 = vld [vmem:[%s1 + $0x124] sm:$0xf]
        %v677 = vld [vmem:[%s1 + $0x128] sm:$0xf]
        %v678 = vld [vmem:[%s1 + $0x12c] sm:$0xf]
        %v679 = vld [vmem:[%s1 + $0x130] sm:$0xf]
        %v680 = vld [vmem:[%s1 + $0x134] sm:$0xf]
        %v681 = vld [vmem:[%s1 + $0x138] sm:$0xf]
        %v682 = vld [vmem:[%s1 + $0x13c] sm:$0xf]
        %v683 = vld [vmem:[%s1 + $0x140] sm:$0xf]
        %v684 = vld [vmem:[%s1 + $0x144] sm:$0xf]
        %v685 = vld [vmem:[%s1 + $0x148] sm:$0xf]
        %v686 = vld [vmem:[%s1 + $0x14c] sm:$0xf]
        %v687 = vld [vmem:[%s1 + $0x150] sm:$0xf]
        %v688 = vld [vmem:[%s1 + $0x154] sm:$0xf]
        %v689 = vld [vmem:[%s1 + $0x158] sm:$0xf]
        %v690 = vld [vmem:[%s1 + $0x15c] sm:$0xf]
        %v691 = vld [vmem:[%s1 + $0x160] sm:$0xf]
        %v692 = vld [vmem:[%s1 + $0x164] sm:$0xf]
        %v693 = vld [vmem:[%s1 + $0x168] sm:$0xf]
        %v694 = vld [vmem:[%s1 + $0x16c] sm:$0xf]
        %v695 = vld [vmem:[%s1 + $0x170] sm:$0xf]
        %v696 = vld [vmem:[%s1 + $0x174] sm:$0xf]
        %v697 = vld [vmem:[%s1 + $0x178] sm:$0xf]
        %v698 = vld [vmem:[%s1 + $0x17c] sm:$0xf]
        %v699 = vld [vmem:[%s1 + $0x180] sm:$0xf]
        %v700 = vld [vmem:[%s1 + $0x184] sm:$0xf]
        %v701 = vld [vmem:[%s2] sm:$0x1]
        %v703 = vlaneseq
        %v704 = vshrl.u32 %v703, 7
        %v705 = vsub.s32 0, %v704
        %v706 = vrot.slane %v701, %v705
        %v716 = vunpack.c.l.b16 %v595
        %v717 = vunpack.c.h.b16 %v595
        %v718 = vunpack.c.l.b16 %v596
        %v719 = vunpack.c.h.b16 %v596
        %v720 = vunpack.c.l.b16 %v597
        %v721 = vunpack.c.h.b16 %v597
        %v722 = vunpack.c.l.b16 %v598
        %v723 = vunpack.c.l.b16 %v599
        %v724 = vunpack.c.h.b16 %v599
        %v725 = vunpack.c.l.b16 %v600
        %v726 = vunpack.c.h.b16 %v600
        %v727 = vunpack.c.l.b16 %v601
        %v728 = vunpack.c.h.b16 %v601
        %v729 = vunpack.c.l.b16 %v602
        %v730 = vpack.c.b16 %v723, %v716
        %v731 = vpack.c.b16 %v724, %v717
        %v732 = vpack.c.b16 %v725, %v718
        %v733 = vpack.c.b16 %v726, %v719
        %v734 = vpack.c.b16 %v727, %v720
        %v735 = vpack.c.b16 %v728, %v721
        %v736 = vpack.c.b16 %v729, %v722
        %v841 = vunpack.c.l.b16 %v603
        %v842 = vunpack.c.l.b16 %v604
        %v843 = vunpack.c.l.b16 %v605
        %v844 = vunpack.c.l.b16 %v606
        %v845 = vunpack.c.l.b16 %v607
        %v846 = vunpack.c.l.b16 %v608
        %v847 = vunpack.c.l.b16 %v609
        %v848 = vunpack.c.l.b16 %v610
        %v849 = vunpack.c.l.b16 %v611
        %v850 = vunpack.c.l.b16 %v612
        %v851 = vunpack.c.l.b16 %v613
        %v852 = vunpack.c.l.b16 %v614
        %v853 = vunpack.c.l.b16 %v615
        %v854 = vunpack.c.l.b16 %v616
        %v855 = vunpack.c.l.b16 %v617
        %v856 = vunpack.c.l.b16 %v618
        %v857 = vunpack.c.l.b16 %v619
        %v858 = vunpack.c.l.b16 %v620
        %v859 = vunpack.c.l.b16 %v621
        %v860 = vunpack.c.l.b16 %v622
        %v861 = vunpack.c.l.b16 %v623
        %v862 = vunpack.c.l.b16 %v624
        %v863 = vunpack.c.l.b16 %v625
        %v864 = vunpack.c.l.b16 %v626
        %v865 = vunpack.c.l.b16 %v627
        %v866 = vunpack.c.l.b16 %v628
        %v867 = vunpack.c.l.b16 %v629
        %v868 = vunpack.c.l.b16 %v630
        %v869 = vunpack.c.l.b16 %v631
        %v870 = vunpack.c.l.b16 %v632
        %v871 = vunpack.c.l.b16 %v633
        %v872 = vunpack.c.l.b16 %v634
        %v873 = vunpack.c.l.b16 %v635
        %v874 = vunpack.c.l.b16 %v636
        %v875 = vunpack.c.l.b16 %v637
        %v876 = vunpack.c.l.b16 %v638
        %v877 = vunpack.c.l.b16 %v639
        %v878 = vunpack.c.l.b16 %v640
        %v879 = vunpack.c.l.b16 %v641
        %v880 = vunpack.c.l.b16 %v642
        %v881 = vunpack.c.l.b16 %v643
        %v882 = vunpack.c.l.b16 %v644
        %v883 = vunpack.c.l.b16 %v645
        %v884 = vunpack.c.l.b16 %v646
        %v885 = vunpack.c.l.b16 %v647
        %v886 = vunpack.c.l.b16 %v648
        %v887 = vunpack.c.l.b16 %v649
        %v888 = vunpack.c.l.b16 %v650
        %v889 = vunpack.c.l.b16 %v651
        %v890 = vunpack.c.l.b16 %v652
        %v891 = vunpack.c.l.b16 %v653
        %v892 = vunpack.c.l.b16 %v654
        %v893 = vunpack.c.l.b16 %v655
        %v894 = vunpack.c.l.b16 %v656
        %v895 = vunpack.c.l.b16 %v657
        %v896 = vunpack.c.l.b16 %v658
        %v897 = vunpack.c.l.b16 %v659
        %v898 = vunpack.c.l.b16 %v660
        %v899 = vunpack.c.l.b16 %v661
        %v900 = vunpack.c.l.b16 %v662
        %v901 = vunpack.c.l.b16 %v663
        %v902 = vunpack.c.l.b16 %v664
        %v903 = vunpack.c.l.b16 %v665
        %v904 = vunpack.c.l.b16 %v666
        %v905 = vunpack.c.l.b16 %v667
        %v906 = vunpack.c.l.b16 %v668
        %v907 = vunpack.c.l.b16 %v669
        %v908 = vunpack.c.l.b16 %v670
        %v909 = vunpack.c.l.b16 %v671
        %v910 = vunpack.c.l.b16 %v672
        %v911 = vunpack.c.l.b16 %v673
        %v912 = vunpack.c.l.b16 %v674
        %v913 = vunpack.c.l.b16 %v675
        %v914 = vunpack.c.l.b16 %v676
        %v915 = vunpack.c.l.b16 %v677
        %v916 = vunpack.c.l.b16 %v678
        %v917 = vunpack.c.l.b16 %v679
        %v918 = vunpack.c.l.b16 %v680
        %v919 = vunpack.c.l.b16 %v681
        %v920 = vunpack.c.l.b16 %v682
        %v921 = vunpack.c.l.b16 %v683
        %v922 = vunpack.c.l.b16 %v684
        %v923 = vunpack.c.l.b16 %v685
        %v924 = vunpack.c.l.b16 %v686
        %v925 = vunpack.c.l.b16 %v687
        %v926 = vunpack.c.l.b16 %v688
        %v927 = vunpack.c.l.b16 %v689
        %v928 = vunpack.c.l.b16 %v690
        %v929 = vunpack.c.l.b16 %v691
        %v930 = vunpack.c.l.b16 %v692
        %v931 = vunpack.c.l.b16 %v693
        %v932 = vunpack.c.l.b16 %v694
        %v933 = vunpack.c.l.b16 %v695
        %v934 = vunpack.c.l.b16 %v696
        %v935 = vunpack.c.l.b16 %v697
        %v936 = vunpack.c.l.b16 %v698
        %v937 = vunpack.c.l.b16 %v699
        %v938 = vunpack.c.l.b16 %v700
        %v939 = vpack.c.b16 %v842, %v841
        %v940 = vpack.c.b16 %v844, %v843
        %v941 = vpack.c.b16 %v846, %v845
        %v942 = vpack.c.b16 %v848, %v847
        %v943 = vpack.c.b16 %v850, %v849
        %v944 = vpack.c.b16 %v852, %v851
        %v945 = vpack.c.b16 %v854, %v853
        %v946 = vpack.c.b16 %v856, %v855
        %v947 = vpack.c.b16 %v858, %v857
        %v948 = vpack.c.b16 %v860, %v859
        %v949 = vpack.c.b16 %v862, %v861
        %v950 = vpack.c.b16 %v864, %v863
        %v951 = vpack.c.b16 %v866, %v865
        %v952 = vpack.c.b16 %v868, %v867
        %v953 = vpack.c.b16 %v870, %v869
        %v954 = vpack.c.b16 %v872, %v871
        %v955 = vpack.c.b16 %v874, %v873
        %v956 = vpack.c.b16 %v876, %v875
        %v957 = vpack.c.b16 %v878, %v877
        %v958 = vpack.c.b16 %v880, %v879
        %v959 = vpack.c.b16 %v882, %v881
        %v960 = vpack.c.b16 %v884, %v883
        %v961 = vpack.c.b16 %v886, %v885
        %v962 = vpack.c.b16 %v888, %v887
        %v963 = vpack.c.b16 %v890, %v889
        %v964 = vpack.c.b16 %v892, %v891
        %v965 = vpack.c.b16 %v894, %v893
        %v966 = vpack.c.b16 %v896, %v895
        %v967 = vpack.c.b16 %v898, %v897
        %v968 = vpack.c.b16 %v900, %v899
        %v969 = vpack.c.b16 %v902, %v901
        %v970 = vpack.c.b16 %v904, %v903
        %v971 = vpack.c.b16 %v906, %v905
        %v972 = vpack.c.b16 %v908, %v907
        %v973 = vpack.c.b16 %v910, %v909
        %v974 = vpack.c.b16 %v912, %v911
        %v975 = vpack.c.b16 %v914, %v913
        %v976 = vpack.c.b16 %v916, %v915
        %v977 = vpack.c.b16 %v918, %v917
        %v978 = vpack.c.b16 %v920, %v919
        %v979 = vpack.c.b16 %v922, %v921
        %v980 = vpack.c.b16 %v924, %v923
        %v981 = vpack.c.b16 %v926, %v925
        %v982 = vpack.c.b16 %v928, %v927
        %v983 = vpack.c.b16 %v930, %v929
        %v984 = vpack.c.b16 %v932, %v931
        %v985 = vpack.c.b16 %v934, %v933
        %v986 = vpack.c.b16 %v936, %v935
        %v987 = vpack.c.b16 %v938, %v937
        %vm1037 = vcmask 130048
        %v1039 = vsel %vm1037, %v736, 0
        %1041 = vmatprep.subr.bf16.mxu0 0
        %1042 = vmatpush1.bf16.msra.mxu0 %v946
        %1043 = vmatprep.subr.bf16.mxu0 0
        %1044 = vmatpush1.bf16.msra.mxu0 %v945
        %1045 = vmatprep.subr.bf16.mxu0 0
        %1046 = vmatpush1.bf16.msra.mxu0 %v944
        %1047 = vmatprep.subr.bf16.mxu0 0
        %1048 = vmatpush1.bf16.msra.mxu0 %v943
        %1049 = vmatprep.subr.bf16.mxu0 0
        %1050 = vmatpush1.bf16.msra.mxu0 %v942
        %1051 = vmatprep.subr.bf16.mxu0 0
        %1052 = vmatpush1.bf16.msra.mxu0 %v941
        %1053 = vmatprep.subr.bf16.mxu0 0
        %1054 = vmatpush1.bf16.msra.mxu0 %v940
        %1055 = vmatprep.subr.bf16.mxu0 0
        %1056 = vmatpush1.bf16.msra.mxu0 %v939
        %1057 = vmatprep.subr.bf16.mxu0 0
        %1058 = vmatpush2.bf16.msra.mxu0 %v954
        %1059 = vmatprep.subr.bf16.mxu0 0
        %1060 = vmatpush2.bf16.msra.mxu0 %v953
        %1061 = vmatprep.subr.bf16.mxu0 0
        %1062 = vmatpush2.bf16.msra.mxu0 %v952
        %1063 = vmatprep.subr.bf16.mxu0 0
        %1064 = vmatpush2.bf16.msra.mxu0 %v951
        %1065 = vmatprep.subr.bf16.mxu0 0
        %1066 = vmatpush2.bf16.msra.mxu0 %v950
        %1067 = vmatprep.subr.bf16.mxu0 0
        %1068 = vmatpush2.bf16.msra.mxu0 %v949
        %1069 = vmatprep.subr.bf16.mxu0 0
        %1070 = vmatpush2.bf16.msra.mxu0 %v948
        %1071 = vmatprep.subr.bf16.mxu0 0
        %1072 = vmatpush2.bf16.msra.mxu0 %v947
        %1073 = vmatprep.mubr.bf16.mxu0 %v731
        %1074 = vmatmul.mubr.bf16.gmra.mxu0 %v730
        %v1075 = vpop.f32.mrf.mxu0
        %v1076 = vadd.f32 %v706, %v1075
        %v1077 = vpop.f32.mrf.mxu0
        %v1078 = vpop.f32.mrf.mxu0
        %v1079 = vadd.f32 %v706, %v1078
        %v1080 = vpop.f32.mrf.mxu0
        %1081 = vdwg.mxu0
        %1082 = vmatprep.subr.bf16.mxu0 0
        %1083 = vmatpush1.bf16.msra.mxu0 %v962
        %1084 = vmatprep.subr.bf16.mxu0 0
        %1085 = vmatpush1.bf16.msra.mxu0 %v961
        %1086 = vmatprep.subr.bf16.mxu0 0
        %1087 = vmatpush1.bf16.msra.mxu0 %v960
        %1088 = vmatprep.subr.bf16.mxu0 0
        %1089 = vmatpush1.bf16.msra.mxu0 %v959
        %1090 = vmatprep.subr.bf16.mxu0 0
        %1091 = vmatpush1.bf16.msra.mxu0 %v958
        %1092 = vmatprep.subr.bf16.mxu0 0
        %1093 = vmatpush1.bf16.msra.mxu0 %v957
        %1094 = vmatprep.subr.bf16.mxu0 0
        %1095 = vmatpush1.bf16.msra.mxu0 %v956
        %1096 = vmatprep.subr.bf16.mxu0 0
        %1097 = vmatpush1.bf16.msra.mxu0 %v955
        %1098 = vmatprep.subr.bf16.mxu0 0
        %1099 = vmatpush2.bf16.msra.mxu0 %v970
        %1100 = vmatprep.subr.bf16.mxu0 0
        %1101 = vmatpush2.bf16.msra.mxu0 %v969
        %1102 = vmatprep.subr.bf16.mxu0 0
        %1103 = vmatpush2.bf16.msra.mxu0 %v968
        %1104 = vmatprep.subr.bf16.mxu0 0
        %1105 = vmatpush2.bf16.msra.mxu0 %v967
        %1106 = vmatprep.subr.bf16.mxu0 0
        %1107 = vmatpush2.bf16.msra.mxu0 %v966
        %1108 = vmatprep.subr.bf16.mxu0 0
        %1109 = vmatpush2.bf16.msra.mxu0 %v965
        %1110 = vmatprep.subr.bf16.mxu0 0
        %1111 = vmatpush2.bf16.msra.mxu0 %v964
        %1112 = vmatprep.subr.bf16.mxu0 0
        %1113 = vmatpush2.bf16.msra.mxu0 %v963
        %1114 = vmatprep.mubr.bf16.mxu0 %v733
        %1115 = vmatmul.mubr.bf16.gmra.mxu0 %v732
        %v1116 = vpop.f32.mrf.mxu0
        %v1117 = vadd.f32 %v1076, %v1116
        %v1118 = vpop.f32.mrf.mxu0
        %v1119 = vpop.f32.mrf.mxu0
        %v1120 = vadd.f32 %v1079, %v1119
        %v1121 = vpop.f32.mrf.mxu0
        %1122 = vdwg.mxu0
        %1123 = vmatprep.subr.bf16.mxu0 0
        %1124 = vmatpush1.bf16.msra.mxu0 %v978
        %1125 = vmatprep.subr.bf16.mxu0 0
        %1126 = vmatpush1.bf16.msra.mxu0 %v977
        %1127 = vmatprep.subr.bf16.mxu0 0
        %1128 = vmatpush1.bf16.msra.mxu0 %v976
        %1129 = vmatprep.subr.bf16.mxu0 0
        %1130 = vmatpush1.bf16.msra.mxu0 %v975
        %1131 = vmatprep.subr.bf16.mxu0 0
        %1132 = vmatpush1.bf16.msra.mxu0 %v974
        %1133 = vmatprep.subr.bf16.mxu0 0
        %1134 = vmatpush1.bf16.msra.mxu0 %v973
        %1135 = vmatprep.subr.bf16.mxu0 0
        %1136 = vmatpush1.bf16.msra.mxu0 %v972
        %1137 = vmatprep.subr.bf16.mxu0 0
        %1138 = vmatpush1.bf16.msra.mxu0 %v971
        %1139 = vmatprep.subr.bf16.mxu0 0
        %1140 = vmatpush2.bf16.msra.mxu0 %v986
        %1141 = vmatprep.subr.bf16.mxu0 0
        %1142 = vmatpush2.bf16.msra.mxu0 %v985
        %1143 = vmatprep.subr.bf16.mxu0 0
        %1144 = vmatpush2.bf16.msra.mxu0 %v984
        %1145 = vmatprep.subr.bf16.mxu0 0
        %1146 = vmatpush2.bf16.msra.mxu0 %v983
        %1147 = vmatprep.subr.bf16.mxu0 0
        %1148 = vmatpush2.bf16.msra.mxu0 %v982
        %1149 = vmatprep.subr.bf16.mxu0 0
        %1150 = vmatpush2.bf16.msra.mxu0 %v981
        %1151 = vmatprep.subr.bf16.mxu0 0
        %1152 = vmatpush2.bf16.msra.mxu0 %v980
        %1153 = vmatprep.subr.bf16.mxu0 0
        %1154 = vmatpush2.bf16.msra.mxu0 %v979
        %1155 = vmatprep.mubr.bf16.mxu0 %v735
        %1156 = vmatmul.mubr.bf16.gmra.mxu0 %v734
        %v1157 = vpop.f32.mrf.mxu0
        %v1158 = vadd.f32 %v1117, %v1157
        %v1159 = vpop.f32.mrf.mxu0
        %v1160 = vpop.f32.mrf.mxu0
        %v1161 = vadd.f32 %v1120, %v1160
        %v1162 = vpop.f32.mrf.mxu0
        %1163 = vdwg.mxu0
        %1164 = vmatprep.subr.bf16.mxu0 0
        %1165 = vmatpush1.bf16.msra.mxu0 0
        %1166 = vmatprep.subr.bf16.mxu0 0
        %1167 = vmatpush1.bf16.msra.mxu0 0
        %1168 = vmatprep.subr.bf16.mxu0 0
        %1169 = vmatpush1.bf16.msra.mxu0 0
        %1170 = vmatprep.subr.bf16.mxu0 0
        %1171 = vmatpush1.bf16.msra.mxu0 0
        %1172 = vmatprep.subr.bf16.mxu0 0
        %1173 = vmatpush1.bf16.msra.mxu0 0
        %1174 = vmatprep.subr.bf16.mxu0 0
        %1175 = vmatpush1.bf16.msra.mxu0 0
        %1176 = vmatprep.subr.bf16.mxu0 0
        %1177 = vmatpush1.bf16.msra.mxu0 0
        %1178 = vmatprep.subr.bf16.mxu0 0
        %1179 = vmatpush1.bf16.msra.mxu0 %v987
        %1180 = vmatprep.subr.bf16.mxu0 0
        %1181 = vmatpush2.bf16.msra.mxu0 0
        %1182 = vmatprep.subr.bf16.mxu0 0
        %1183 = vmatpush2.bf16.msra.mxu0 0
        %1184 = vmatprep.subr.bf16.mxu0 0
        %1185 = vmatpush2.bf16.msra.mxu0 0
        %1186 = vmatprep.subr.bf16.mxu0 0
        %1187 = vmatpush2.bf16.msra.mxu0 0
        %1188 = vmatprep.subr.bf16.mxu0 0
        %1189 = vmatpush2.bf16.msra.mxu0 0
        %1190 = vmatprep.subr.bf16.mxu0 0
        %1191 = vmatpush2.bf16.msra.mxu0 0
        %1192 = vmatprep.subr.bf16.mxu0 0
        %1193 = vmatpush2.bf16.msra.mxu0 0
        %1194 = vmatprep.subr.bf16.mxu0 0
        %1195 = vmatpush2.bf16.msra.mxu0 0
        %1196 = vmatprep.mubr.bf16.mxu0 0
        %1197 = vmatmul.mubr.bf16.gmra.mxu0 %v1039
        %v1198 = vpop.f32.mrf.mxu0
        %v1199 = vadd.f32 %v1158, %v1198
        %v1200 = vpop.f32.mrf.mxu0
        %v1201 = vpop.f32.mrf.mxu0
        %v1202 = vadd.f32 %v1161, %v1201
        %v1203 = vpop.f32.mrf.mxu0
        %1204 = vdwg.mxu0
        %v1205 = vtanh.pop %v1199
        %v1206 = vtanh.pop %v1202
        %v1207 = vpack.c.bf16 %v1206, %v1205
        %v1208 = vld [vmem:[%s3] sm:$0xf]
        %v1209 = vld [vmem:[%s3 + $0x4] sm:$0xf]
        %v1210 = vld [vmem:[%s3 + $0x8] sm:$0xf]
        %v1211 = vld [vmem:[%s3 + $0xc] sm:$0xf]
        %v1212 = vld [vmem:[%s3 + $0x10] sm:$0xf]
        %v1213 = vld [vmem:[%s3 + $0x14] sm:$0xf]
        %v1214 = vld [vmem:[%s3 + $0x18] sm:$0xf]
        %v1215 = vld [vmem:[%s3 + $0x1c] sm:$0xf]
        %v1216 = vld [vmem:[%s3 + $0x20] sm:$0xf]
        %v1217 = vld [vmem:[%s3 + $0x24] sm:$0xf]
        %v1218 = vld [vmem:[%s3 + $0x28] sm:$0xf]
        %v1219 = vld [vmem:[%s3 + $0x2c] sm:$0xf]
        %v1220 = vld [vmem:[%s3 + $0x30] sm:$0xf]
        %v1221 = vld [vmem:[%s3 + $0x34] sm:$0xf]
        %v1222 = vld [vmem:[%s3 + $0x38] sm:$0xf]
        %v1223 = vld [vmem:[%s3 + $0x3c] sm:$0xf]
        %v1224 = vld [vmem:[%s4] sm:$0x1]
        %v1226 = vlaneseq
        %v1227 = vshrl.u32 %v1226, 7
        %v1228 = vsub.s32 0, %v1227
        %v1229 = vrot.slane %v1224, %v1228
        %v1247 = vunpack.c.l.b16 %v1208
        %v1248 = vunpack.c.l.b16 %v1209
        %v1249 = vunpack.c.l.b16 %v1210
        %v1250 = vunpack.c.l.b16 %v1211
        %v1251 = vunpack.c.l.b16 %v1212
        %v1252 = vunpack.c.l.b16 %v1213
        %v1253 = vunpack.c.l.b16 %v1214
        %v1254 = vunpack.c.l.b16 %v1215
        %v1255 = vunpack.c.l.b16 %v1216
        %v1256 = vunpack.c.l.b16 %v1217
        %v1257 = vunpack.c.l.b16 %v1218
        %v1258 = vunpack.c.l.b16 %v1219
        %v1259 = vunpack.c.l.b16 %v1220
        %v1260 = vunpack.c.l.b16 %v1221
        %v1261 = vunpack.c.l.b16 %v1222
        %v1262 = vunpack.c.l.b16 %v1223
        %v1263 = vpack.c.b16 %v1248, %v1247
        %v1264 = vpack.c.b16 %v1250, %v1249
        %v1265 = vpack.c.b16 %v1252, %v1251
        %v1266 = vpack.c.b16 %v1254, %v1253
        %v1267 = vpack.c.b16 %v1256, %v1255
        %v1268 = vpack.c.b16 %v1258, %v1257
        %v1269 = vpack.c.b16 %v1260, %v1259
        %v1270 = vpack.c.b16 %v1262, %v1261
        %1279 = vmatprep.subr.bf16.mxu0 0
        %1280 = vmatpush1.bf16.msra.mxu0 %v1270
        %1281 = vmatprep.subr.bf16.mxu0 0
        %1282 = vmatpush1.bf16.msra.mxu0 %v1269
        %1283 = vmatprep.subr.bf16.mxu0 0
        %1284 = vmatpush1.bf16.msra.mxu0 %v1268
        %1285 = vmatprep.subr.bf16.mxu0 0
        %1286 = vmatpush1.bf16.msra.mxu0 %v1267
        %1287 = vmatprep.subr.bf16.mxu0 0
        %1288 = vmatpush1.bf16.msra.mxu0 %v1266
        %1289 = vmatprep.subr.bf16.mxu0 0
        %1290 = vmatpush1.bf16.msra.mxu0 %v1265
        %1291 = vmatprep.subr.bf16.mxu0 0
        %1292 = vmatpush1.bf16.msra.mxu0 %v1264
        %1293 = vmatprep.subr.bf16.mxu0 0
        %1294 = vmatpush1.bf16.msra.mxu0 %v1263
        %1295 = vmatprep.subr.bf16.mxu0 0
        %1296 = vmatpush2.bf16.msra.mxu0 0
        %1297 = vmatprep.subr.bf16.mxu0 0
        %1298 = vmatpush2.bf16.msra.mxu0 0
        %1299 = vmatprep.subr.bf16.mxu0 0
        %1300 = vmatpush2.bf16.msra.mxu0 0
        %1301 = vmatprep.subr.bf16.mxu0 0
        %1302 = vmatpush2.bf16.msra.mxu0 0
        %1303 = vmatprep.subr.bf16.mxu0 0
        %1304 = vmatpush2.bf16.msra.mxu0 0
        %1305 = vmatprep.subr.bf16.mxu0 0
        %1306 = vmatpush2.bf16.msra.mxu0 0
        %1307 = vmatprep.subr.bf16.mxu0 0
        %1308 = vmatpush2.bf16.msra.mxu0 0
        %1309 = vmatprep.subr.bf16.mxu0 0
        %1310 = vmatpush2.bf16.msra.mxu0 0
        %1311 = vmatprep.mubr.bf16.mxu0 0
        %1312 = vmatmul.mubr.bf16.gmra.mxu0 %v1207
        %v1313 = vpop.f32.mrf.mxu0
        %v1314 = vadd.f32 %v1229, %v1313
        %v1315 = vpop.f32.mrf.mxu0
        %v1316 = vpop.f32.mrf.mxu0
        %v1317 = vadd.f32 %v1229, %v1316
        %v1318 = vpop.f32.mrf.mxu0
        %1319 = vdwg.mxu0
        %v1320 = vtanh.pop %v1314
        %v1321 = vtanh.pop %v1317
        %v1322 = vpack.c.bf16 %v1321, %v1320
        %v1323 = vld [vmem:[%s5] sm:$0xf]
        %v1324 = vld [vmem:[%s5 + $0x4] sm:$0xf]
        %v1325 = vld [vmem:[%s5 + $0x8] sm:$0xf]
        %v1326 = vld [vmem:[%s5 + $0xc] sm:$0xf]
        %v1327 = vld [vmem:[%s5 + $0x10] sm:$0xf]
        %v1328 = vld [vmem:[%s5 + $0x14] sm:$0xf]
        %v1329 = vld [vmem:[%s5 + $0x18] sm:$0xf]
        %v1330 = vld [vmem:[%s5 + $0x1c] sm:$0xf]
        %v1331 = vld [vmem:[%s6] sm:$0x1]
        %v1333 = vlaneseq
        %v1334 = vshrl.u32 %v1333, 7
        %v1335 = vsub.s32 0, %v1334
        %v1336 = vrot.slane %v1331, %v1335
        %v1346 = vunpack.c.l.b16 %v1323
        %v1347 = vunpack.c.l.b16 %v1324
        %v1348 = vunpack.c.l.b16 %v1325
        %v1349 = vunpack.c.l.b16 %v1326
        %v1350 = vunpack.c.l.b16 %v1327
        %v1351 = vunpack.c.l.b16 %v1328
        %v1352 = vunpack.c.l.b16 %v1329
        %v1353 = vunpack.c.l.b16 %v1330
        %v1354 = vpack.c.b16 %v1347, %v1346
        %v1355 = vpack.c.b16 %v1349, %v1348
        %v1356 = vpack.c.b16 %v1351, %v1350
        %v1357 = vpack.c.b16 %v1353, %v1352
        %vm1362 = vcmask 523264
        %v1364 = vsel %vm1362, %v1322, 0
        %1366 = vmatprep.subr.bf16.mxu0 0
        %1367 = vmatpush1.bf16.msra.mxu0 0
        %1368 = vmatprep.subr.bf16.mxu0 0
        %1369 = vmatpush1.bf16.msra.mxu0 0
        %1370 = vmatprep.subr.bf16.mxu0 0
        %1371 = vmatpush1.bf16.msra.mxu0 0
        %1372 = vmatprep.subr.bf16.mxu0 0
        %1373 = vmatpush1.bf16.msra.mxu0 0
        %1374 = vmatprep.subr.bf16.mxu0 0
        %1375 = vmatpush1.bf16.msra.mxu0 %v1357
        %1376 = vmatprep.subr.bf16.mxu0 0
        %1377 = vmatpush1.bf16.msra.mxu0 %v1356
        %1378 = vmatprep.subr.bf16.mxu0 0
        %1379 = vmatpush1.bf16.msra.mxu0 %v1355
        %1380 = vmatprep.subr.bf16.mxu0 0
        %1381 = vmatpush1.bf16.msra.mxu0 %v1354
        %1382 = vmatprep.subr.bf16.mxu0 0
        %1383 = vmatpush2.bf16.msra.mxu0 0
        %1384 = vmatprep.subr.bf16.mxu0 0
        %1385 = vmatpush2.bf16.msra.mxu0 0
        %1386 = vmatprep.subr.bf16.mxu0 0
        %1387 = vmatpush2.bf16.msra.mxu0 0
        %1388 = vmatprep.subr.bf16.mxu0 0
        %1389 = vmatpush2.bf16.msra.mxu0 0
        %1390 = vmatprep.subr.bf16.mxu0 0
        %1391 = vmatpush2.bf16.msra.mxu0 0
        %1392 = vmatprep.subr.bf16.mxu0 0
        %1393 = vmatpush2.bf16.msra.mxu0 0
        %1394 = vmatprep.subr.bf16.mxu0 0
        %1395 = vmatpush2.bf16.msra.mxu0 0
        %1396 = vmatprep.subr.bf16.mxu0 0
        %1397 = vmatpush2.bf16.msra.mxu0 0
        %1398 = vmatprep.mubr.bf16.mxu0 0
        %1399 = vmatmul.mubr.bf16.gmra.mxu0 %v1364
        %v1400 = vpop.f32.mrf.mxu0
        %v1401 = vadd.f32 %v1336, %v1400
        %v1402 = vpop.f32.mrf.mxu0
        %v1403 = vpop.f32.mrf.mxu0
        %v1404 = vadd.f32 %v1336, %v1403
        %v1405 = vpop.f32.mrf.mxu0
        %1406 = vdwg.mxu0
        %v1407 = vtanh.pop %v1401
        %v1408 = vtanh.pop %v1404
        %v1409 = vpack.c.bf16 %v1408, %v1407
        %v1410 = vld [vmem:[%s7] sm:$0xf]
        %v1411 = vld [vmem:[%s7 + $0x4] sm:$0x3]
        %v1412 = vld [vmem:[%s8] sm:$0x1]
        %v1414 = vlaneseq
        %v1415 = vshrl.u32 %v1414, 7
        %v1416 = vsub.s32 0, %v1415
        %v1417 = vrot.slane %v1412, %v1416
        %v1421 = vunpack.c.l.b16 %v1410
        %v1422 = vunpack.c.l.b16 %v1411
        %v1423 = vpack.c.b16 %v1422, %v1421
        %vm1424 = vcmask 97280
        %v1426 = vsel %vm1424, %v1409, 0
        %vm1428 = vcmask 1045504
        %v1430 = vsel %vm1428, %v1423, 0
        %1432 = vmatprep.subr.bf16.mxu0 0
        %1433 = vmatpush1.bf16.msra.mxu0 0
        %1434 = vmatprep.subr.bf16.mxu0 0
        %1435 = vmatpush1.bf16.msra.mxu0 0
        %1436 = vmatprep.subr.bf16.mxu0 0
        %1437 = vmatpush1.bf16.msra.mxu0 0
        %1438 = vmatprep.subr.bf16.mxu0 0
        %1439 = vmatpush1.bf16.msra.mxu0 0
        %1440 = vmatprep.subr.bf16.mxu0 0
        %1441 = vmatpush1.bf16.msra.mxu0 0
        %1442 = vmatprep.subr.bf16.mxu0 0
        %1443 = vmatpush1.bf16.msra.mxu0 0
        %1444 = vmatprep.subr.bf16.mxu0 0
        %1445 = vmatpush1.bf16.msra.mxu0 0
        %1446 = vmatprep.subr.bf16.mxu0 0
        %1447 = vmatpush1.bf16.msra.mxu0 %v1430
        %1448 = vmatprep.subr.bf16.mxu0 0
        %1449 = vmatpush2.bf16.msra.mxu0 0
        %1450 = vmatprep.subr.bf16.mxu0 0
        %1451 = vmatpush2.bf16.msra.mxu0 0
        %1452 = vmatprep.subr.bf16.mxu0 0
        %1453 = vmatpush2.bf16.msra.mxu0 0
        %1454 = vmatprep.subr.bf16.mxu0 0
        %1455 = vmatpush2.bf16.msra.mxu0 0
        %1456 = vmatprep.subr.bf16.mxu0 0
        %1457 = vmatpush2.bf16.msra.mxu0 0
        %1458 = vmatprep.subr.bf16.mxu0 0
        %1459 = vmatpush2.bf16.msra.mxu0 0
        %1460 = vmatprep.subr.bf16.mxu0 0
        %1461 = vmatpush2.bf16.msra.mxu0 0
        %1462 = vmatprep.subr.bf16.mxu0 0
        %1463 = vmatpush2.bf16.msra.mxu0 0
        %1464 = vmatprep.mubr.bf16.mxu0 0
        %1465 = vmatmul.mubr.bf16.gmra.mxu0 %v1426
        %v1466 = vpop.f32.mrf.mxu0
        %v1467 = vadd.f32 %v1417, %v1466
        %v1468 = vpop.f32.mrf.mxu0
        %v1469 = vpop.f32.mrf.mxu0
        %v1470 = vadd.f32 %v1417, %v1469
        %v1471 = vpop.f32.mrf.mxu0
        %1472 = vdwg.mxu0
        %vm1473 = vcmask 23552
        %1474 = vst.msk [vmem:[%s591] sm:$0xff] %vm1473, %v1467
        %1475 = vst.msk [vmem:[%s591 + $0x8] sm:$0xff] %vm1473, %v1470
        %v1476 = vpack.c.bf16 %v1470, %v1467
        %v1477 = vld [vmem:[%s9] sm:$0x3]
        %v1478 = vld [vmem:[%s10] sm:$0x1]
        %v1480 = vlaneseq
        %v1481 = vshrl.u32 %v1480, 7
        %v1482 = vsub.s32 0, %v1481
        %v1483 = vrot.slane %v1478, %v1482
        %v1486 = vsel %vm1473, %v1476, 0
        %vm1488 = vcmask 1040384
        %vm1489 = vcmask 1041408
        %v1490 = vsel %vm1488, 4294967295, 65535
        %v1491 = vsel %vm1489, %v1490, 0
        %v1493 = vand.u32 %v1477, %v1491
        %1495 = vmatprep.subr.bf16.mxu0 0
        %1496 = vmatpush1.bf16.msra.mxu0 0
        %1497 = vmatprep.subr.bf16.mxu0 0
        %1498 = vmatpush1.bf16.msra.mxu0 0
        %1499 = vmatprep.subr.bf16.mxu0 0
        %1500 = vmatpush1.bf16.msra.mxu0 0
        %1501 = vmatprep.subr.bf16.mxu0 0
        %1502 = vmatpush1.bf16.msra.mxu0 0
        %1503 = vmatprep.subr.bf16.mxu0 0
        %1504 = vmatpush1.bf16.msra.mxu0 0
        %1505 = vmatprep.subr.bf16.mxu0 0
        %1506 = vmatpush1.bf16.msra.mxu0 0
        %1507 = vmatprep.subr.bf16.mxu0 0
        %1508 = vmatpush1.bf16.msra.mxu0 0
        %1509 = vmatprep.subr.bf16.mxu0 0
        %1510 = vmatpush1.bf16.msra.mxu0 %v1493
        %1511 = vmatprep.subr.bf16.mxu0 0
        %1512 = vmatpush2.bf16.msra.mxu0 0
        %1513 = vmatprep.subr.bf16.mxu0 0
        %1514 = vmatpush2.bf16.msra.mxu0 0
        %1515 = vmatprep.subr.bf16.mxu0 0
        %1516 = vmatpush2.bf16.msra.mxu0 0
        %1517 = vmatprep.subr.bf16.mxu0 0
        %1518 = vmatpush2.bf16.msra.mxu0 0
        %1519 = vmatprep.subr.bf16.mxu0 0
        %1520 = vmatpush2.bf16.msra.mxu0 0
        %1521 = vmatprep.subr.bf16.mxu0 0
        %1522 = vmatpush2.bf16.msra.mxu0 0
        %1523 = vmatprep.subr.bf16.mxu0 0
        %1524 = vmatpush2.bf16.msra.mxu0 0
        %1525 = vmatprep.subr.bf16.mxu0 0
        %1526 = vmatpush2.bf16.msra.mxu0 0
        %1527 = vmatprep.mubr.bf16.mxu0 0
        %1528 = vmatmul.mubr.bf16.gmra.mxu0 %v1486
        %v1529 = vpop.f32.mrf.mxu0
        %v1530 = vadd.f32 %v1483, %v1529
        %v1531 = vpop.f32.mrf.mxu0
        %v1532 = vpop.f32.mrf.mxu0
        %v1533 = vadd.f32 %v1483, %v1532
        %v1534 = vpop.f32.mrf.mxu0
        %1535 = vdwg.mxu0
        %v1536 = vtanh.pop %v1530
        %v1537 = vtanh.pop %v1533
        %v1538 = vpack.c.bf16 %v1537, %v1536
        %v1539 = vld [vmem:[%s11] sm:$0xf]
        %v1540 = vld [vmem:[%s11 + $0x4] sm:$0x3]
        %v1541 = vld [vmem:[%s12] sm:$0x1]
        %v1543 = vlaneseq
        %v1544 = vshrl.u32 %v1543, 7
        %v1545 = vsub.s32 0, %v1544
        %v1546 = vrot.slane %v1541, %v1545
        %v1550 = vunpack.c.l.b16 %v1539
        %v1551 = vunpack.c.l.b16 %v1540
        %v1552 = vpack.c.b16 %v1551, %v1550
        %v1554 = vsel %vm1424, %v1538, 0
        %v1557 = vsel %vm1428, %v1552, 0
        %1559 = vmatprep.subr.bf16.mxu0 0
        %1560 = vmatpush1.bf16.msra.mxu0 0
        %1561 = vmatprep.subr.bf16.mxu0 0
        %1562 = vmatpush1.bf16.msra.mxu0 0
        %1563 = vmatprep.subr.bf16.mxu0 0
        %1564 = vmatpush1.bf16.msra.mxu0 0
        %1565 = vmatprep.subr.bf16.mxu0 0
        %1566 = vmatpush1.bf16.msra.mxu0 0
        %1567 = vmatprep.subr.bf16.mxu0 0
        %1568 = vmatpush1.bf16.msra.mxu0 0
        %1569 = vmatprep.subr.bf16.mxu0 0
        %1570 = vmatpush1.bf16.msra.mxu0 0
        %1571 = vmatprep.subr.bf16.mxu0 0
        %1572 = vmatpush1.bf16.msra.mxu0 0
        %1573 = vmatprep.subr.bf16.mxu0 0
        %1574 = vmatpush1.bf16.msra.mxu0 %v1557
        %1575 = vmatprep.subr.bf16.mxu0 0
        %1576 = vmatpush2.bf16.msra.mxu0 0
        %1577 = vmatprep.subr.bf16.mxu0 0
        %1578 = vmatpush2.bf16.msra.mxu0 0
        %1579 = vmatprep.subr.bf16.mxu0 0
        %1580 = vmatpush2.bf16.msra.mxu0 0
        %1581 = vmatprep.subr.bf16.mxu0 0
        %1582 = vmatpush2.bf16.msra.mxu0 0
        %1583 = vmatprep.subr.bf16.mxu0 0
        %1584 = vmatpush2.bf16.msra.mxu0 0
        %1585 = vmatprep.subr.bf16.mxu0 0
        %1586 = vmatpush2.bf16.msra.mxu0 0
        %1587 = vmatprep.subr.bf16.mxu0 0
        %1588 = vmatpush2.bf16.msra.mxu0 0
        %1589 = vmatprep.subr.bf16.mxu0 0
        %1590 = vmatpush2.bf16.msra.mxu0 0
        %1591 = vmatprep.mubr.bf16.mxu0 0
        %1592 = vmatmul.mubr.bf16.gmra.mxu0 %v1554
        %v1593 = vpop.f32.mrf.mxu0
        %v1594 = vadd.f32 %v1546, %v1593
        %v1595 = vpop.f32.mrf.mxu0
        %v1596 = vpop.f32.mrf.mxu0
        %v1597 = vadd.f32 %v1546, %v1596
        %v1598 = vpop.f32.mrf.mxu0
        %1599 = vdwg.mxu0
        %v1600 = vtanh.pop %v1594
        %v1601 = vtanh.pop %v1597
        %v1602 = vpack.c.bf16 %v1601, %v1600
        %v1603 = vld [vmem:[%s13] sm:$0xf]
        %v1604 = vld [vmem:[%s13 + $0x4] sm:$0xf]
        %v1605 = vld [vmem:[%s13 + $0x8] sm:$0xf]
        %v1606 = vld [vmem:[%s13 + $0xc] sm:$0xf]
        %v1607 = vld [vmem:[%s13 + $0x10] sm:$0xf]
        %v1608 = vld [vmem:[%s13 + $0x14] sm:$0xf]
        %v1609 = vld [vmem:[%s13 + $0x18] sm:$0xf]
        %v1610 = vld [vmem:[%s13 + $0x1c] sm:$0xf]
        %v1611 = vld [vmem:[%s14] sm:$0x1]
        %v1613 = vlaneseq
        %v1614 = vshrl.u32 %v1613, 7
        %v1615 = vsub.s32 0, %v1614
        %v1616 = vrot.slane %v1611, %v1615
        %v1626 = vunpack.c.l.b16 %v1603
        %v1627 = vunpack.c.l.b16 %v1604
        %v1628 = vunpack.c.l.b16 %v1605
        %v1629 = vunpack.c.l.b16 %v1606
        %v1630 = vunpack.c.l.b16 %v1607
        %v1631 = vunpack.c.l.b16 %v1608
        %v1632 = vunpack.c.l.b16 %v1609
        %v1633 = vunpack.c.l.b16 %v1610
        %v1634 = vpack.c.b16 %v1627, %v1626
        %v1635 = vpack.c.b16 %v1629, %v1628
        %v1636 = vpack.c.b16 %v1631, %v1630
        %v1637 = vpack.c.b16 %v1633, %v1632
        %v1643 = vsel %vm1362, %v1602, 0
        %1645 = vmatprep.subr.bf16.mxu0 0
        %1646 = vmatpush1.bf16.msra.mxu0 0
        %1647 = vmatprep.subr.bf16.mxu0 0
        %1648 = vmatpush1.bf16.msra.mxu0 0
        %1649 = vmatprep.subr.bf16.mxu0 0
        %1650 = vmatpush1.bf16.msra.mxu0 0
        %1651 = vmatprep.subr.bf16.mxu0 0
        %1652 = vmatpush1.bf16.msra.mxu0 0
        %1653 = vmatprep.subr.bf16.mxu0 0
        %1654 = vmatpush1.bf16.msra.mxu0 %v1637
        %1655 = vmatprep.subr.bf16.mxu0 0
        %1656 = vmatpush1.bf16.msra.mxu0 %v1636
        %1657 = vmatprep.subr.bf16.mxu0 0
        %1658 = vmatpush1.bf16.msra.mxu0 %v1635
        %1659 = vmatprep.subr.bf16.mxu0 0
        %1660 = vmatpush1.bf16.msra.mxu0 %v1634
        %1661 = vmatprep.subr.bf16.mxu0 0
        %1662 = vmatpush2.bf16.msra.mxu0 0
        %1663 = vmatprep.subr.bf16.mxu0 0
        %1664 = vmatpush2.bf16.msra.mxu0 0
        %1665 = vmatprep.subr.bf16.mxu0 0
        %1666 = vmatpush2.bf16.msra.mxu0 0
        %1667 = vmatprep.subr.bf16.mxu0 0
        %1668 = vmatpush2.bf16.msra.mxu0 0
        %1669 = vmatprep.subr.bf16.mxu0 0
        %1670 = vmatpush2.bf16.msra.mxu0 0
        %1671 = vmatprep.subr.bf16.mxu0 0
        %1672 = vmatpush2.bf16.msra.mxu0 0
        %1673 = vmatprep.subr.bf16.mxu0 0
        %1674 = vmatpush2.bf16.msra.mxu0 0
        %1675 = vmatprep.subr.bf16.mxu0 0
        %1676 = vmatpush2.bf16.msra.mxu0 0
        %1677 = vmatprep.mubr.bf16.mxu0 0
        %1678 = vmatmul.mubr.bf16.gmra.mxu0 %v1643
        %v1679 = vpop.f32.mrf.mxu0
        %v1680 = vadd.f32 %v1616, %v1679
        %v1681 = vpop.f32.mrf.mxu0
        %v1682 = vpop.f32.mrf.mxu0
        %v1683 = vadd.f32 %v1616, %v1682
        %v1684 = vpop.f32.mrf.mxu0
        %1685 = vdwg.mxu0
        %v1686 = vtanh.pop %v1680
        %v1687 = vtanh.pop %v1683
        %v1688 = vpack.c.bf16 %v1687, %v1686
        %v1689 = vld [vmem:[%s15] sm:$0xff]
        %v1690 = vld [vmem:[%s15 + $0x8] sm:$0xff]
        %v1691 = vld [vmem:[%s15 + $0x10] sm:$0xff]
        %v1692 = vld [vmem:[%s15 + $0x18] sm:$0xf]
        %v1693 = vld [vmem:[%s15 + $0x1c] sm:$0xff]
        %v1694 = vld [vmem:[%s15 + $0x24] sm:$0xff]
        %v1695 = vld [vmem:[%s15 + $0x2c] sm:$0xff]
        %v1696 = vld [vmem:[%s15 + $0x34] sm:$0xf]
        %v1697 = vld [vmem:[%s15 + $0x38] sm:$0xff]
        %v1698 = vld [vmem:[%s15 + $0x40] sm:$0xff]
        %v1699 = vld [vmem:[%s15 + $0x48] sm:$0xff]
        %v1700 = vld [vmem:[%s15 + $0x50] sm:$0xf]
        %v1701 = vld [vmem:[%s15 + $0x54] sm:$0xff]
        %v1702 = vld [vmem:[%s15 + $0x5c] sm:$0xff]
        %v1703 = vld [vmem:[%s15 + $0x64] sm:$0xff]
        %v1704 = vld [vmem:[%s15 + $0x6c] sm:$0xf]
        %v1705 = vld [vmem:[%s15 + $0x70] sm:$0xff]
        %v1706 = vld [vmem:[%s15 + $0x78] sm:$0xff]
        %v1707 = vld [vmem:[%s15 + $0x80] sm:$0xff]
        %v1708 = vld [vmem:[%s15 + $0x88] sm:$0xf]
        %v1709 = vld [vmem:[%s15 + $0x8c] sm:$0xff]
        %v1710 = vld [vmem:[%s15 + $0x94] sm:$0xff]
        %v1711 = vld [vmem:[%s15 + $0x9c] sm:$0xff]
        %v1712 = vld [vmem:[%s15 + $0xa4] sm:$0xf]
        %v1713 = vld [vmem:[%s15 + $0xa8] sm:$0xff]
        %v1714 = vld [vmem:[%s15 + $0xb0] sm:$0xff]
        %v1715 = vld [vmem:[%s15 + $0xb8] sm:$0xff]
        %v1716 = vld [vmem:[%s15 + $0xc0] sm:$0xf]
        %v1717 = vld [vmem:[%s15 + $0xc4] sm:$0xff]
        %v1718 = vld [vmem:[%s15 + $0xcc] sm:$0xff]
        %v1719 = vld [vmem:[%s15 + $0xd4] sm:$0xff]
        %v1720 = vld [vmem:[%s15 + $0xdc] sm:$0xf]
        %v1721 = vld [vmem:[%s15 + $0xe0] sm:$0xff]
        %v1722 = vld [vmem:[%s15 + $0xe8] sm:$0xff]
        %v1723 = vld [vmem:[%s15 + $0xf0] sm:$0xff]
        %v1724 = vld [vmem:[%s15 + $0xf8] sm:$0xf]
        %v1725 = vld [vmem:[%s15 + $0xfc] sm:$0xff]
        %v1726 = vld [vmem:[%s15 + $0x104] sm:$0xff]
        %v1727 = vld [vmem:[%s15 + $0x10c] sm:$0xff]
        %v1728 = vld [vmem:[%s15 + $0x114] sm:$0xf]
        %v1729 = vld [vmem:[%s15 + $0x118] sm:$0xff]
        %v1730 = vld [vmem:[%s15 + $0x120] sm:$0xff]
        %v1731 = vld [vmem:[%s15 + $0x128] sm:$0xff]
        %v1732 = vld [vmem:[%s15 + $0x130] sm:$0xf]
        %v1733 = vld [vmem:[%s15 + $0x134] sm:$0xff]
        %v1734 = vld [vmem:[%s15 + $0x13c] sm:$0xff]
        %v1735 = vld [vmem:[%s15 + $0x144] sm:$0xff]
        %v1736 = vld [vmem:[%s15 + $0x14c] sm:$0xf]
        %v1737 = vld [vmem:[%s15 + $0x150] sm:$0xff]
        %v1738 = vld [vmem:[%s15 + $0x158] sm:$0xff]
        %v1739 = vld [vmem:[%s15 + $0x160] sm:$0xff]
        %v1740 = vld [vmem:[%s15 + $0x168] sm:$0xf]
        %v1741 = vld [vmem:[%s15 + $0x16c] sm:$0xff]
        %v1742 = vld [vmem:[%s15 + $0x174] sm:$0xff]
        %v1743 = vld [vmem:[%s15 + $0x17c] sm:$0xff]
        %v1744 = vld [vmem:[%s15 + $0x184] sm:$0xf]
        %v1745 = vld [vmem:[%s15 + $0x188] sm:$0xff]
        %v1746 = vld [vmem:[%s15 + $0x190] sm:$0xff]
        %v1747 = vld [vmem:[%s15 + $0x198] sm:$0xff]
        %v1748 = vld [vmem:[%s15 + $0x1a0] sm:$0xf]
        %v1749 = vld [vmem:[%s15 + $0x1a4] sm:$0xff]
        %v1750 = vld [vmem:[%s15 + $0x1ac] sm:$0xff]
        %v1751 = vld [vmem:[%s15 + $0x1b4] sm:$0xff]
        %v1752 = vld [vmem:[%s15 + $0x1bc] sm:$0xf]
        %v1753 = vld [vmem:[%s16] sm:$0x7f]
        %v1755 = vlaneseq
        %v1756 = vshrl.u32 %v1755, 7
        %v1757 = vsub.s32 0, %v1756
        %v1758 = vrot.slane %v1753, %v1757
        %v1759 = vlaneseq
        %v1760 = vshrl.u32 %v1759, 7
        %v1761 = vsub.s32 1, %v1760
        %v1762 = vrot.slane %v1753, %v1761
        %v1763 = vlaneseq
        %v1764 = vshrl.u32 %v1763, 7
        %v1765 = vsub.s32 2, %v1764
        %v1766 = vrot.slane %v1753, %v1765
        %v1767 = vlaneseq
        %v1768 = vshrl.u32 %v1767, 7
        %v1769 = vsub.s32 3, %v1768
        %v1770 = vrot.slane %v1753, %v1769
        %v1771 = vlaneseq
        %v1772 = vshrl.u32 %v1771, 7
        %v1773 = vsub.s32 4, %v1772
        %v1774 = vrot.slane %v1753, %v1773
        %v1775 = vlaneseq
        %v1776 = vshrl.u32 %v1775, 7
        %v1777 = vsub.s32 5, %v1776
        %v1778 = vrot.slane %v1753, %v1777
        %v1779 = vlaneseq
        %v1780 = vshrl.u32 %v1779, 7
        %v1781 = vsub.s32 6, %v1780
        %v1782 = vrot.slane %v1753, %v1781
        %v1854 = vunpack.c.l.b16 %v1689
        %v1855 = vunpack.c.h.b16 %v1689
        %v1856 = vunpack.c.l.b16 %v1690
        %v1857 = vunpack.c.h.b16 %v1690
        %v1858 = vunpack.c.l.b16 %v1691
        %v1859 = vunpack.c.h.b16 %v1691
        %v1860 = vunpack.c.l.b16 %v1692
        %v1861 = vunpack.c.l.b16 %v1693
        %v1862 = vunpack.c.h.b16 %v1693
        %v1863 = vunpack.c.l.b16 %v1694
        %v1864 = vunpack.c.h.b16 %v1694
        %v1865 = vunpack.c.l.b16 %v1695
        %v1866 = vunpack.c.h.b16 %v1695
        %v1867 = vunpack.c.l.b16 %v1696
        %v1868 = vunpack.c.l.b16 %v1697
        %v1869 = vunpack.c.h.b16 %v1697
        %v1870 = vunpack.c.l.b16 %v1698
        %v1871 = vunpack.c.h.b16 %v1698
        %v1872 = vunpack.c.l.b16 %v1699
        %v1873 = vunpack.c.h.b16 %v1699
        %v1874 = vunpack.c.l.b16 %v1700
        %v1875 = vunpack.c.l.b16 %v1701
        %v1876 = vunpack.c.h.b16 %v1701
        %v1877 = vunpack.c.l.b16 %v1702
        %v1878 = vunpack.c.h.b16 %v1702
        %v1879 = vunpack.c.l.b16 %v1703
        %v1880 = vunpack.c.h.b16 %v1703
        %v1881 = vunpack.c.l.b16 %v1704
        %v1882 = vunpack.c.l.b16 %v1705
        %v1883 = vunpack.c.h.b16 %v1705
        %v1884 = vunpack.c.l.b16 %v1706
        %v1885 = vunpack.c.h.b16 %v1706
        %v1886 = vunpack.c.l.b16 %v1707
        %v1887 = vunpack.c.h.b16 %v1707
        %v1888 = vunpack.c.l.b16 %v1708
        %v1889 = vunpack.c.l.b16 %v1709
        %v1890 = vunpack.c.h.b16 %v1709
        %v1891 = vunpack.c.l.b16 %v1710
        %v1892 = vunpack.c.h.b16 %v1710
        %v1893 = vunpack.c.l.b16 %v1711
        %v1894 = vunpack.c.h.b16 %v1711
        %v1895 = vunpack.c.l.b16 %v1712
        %v1896 = vunpack.c.l.b16 %v1713
        %v1897 = vunpack.c.h.b16 %v1713
        %v1898 = vunpack.c.l.b16 %v1714
        %v1899 = vunpack.c.h.b16 %v1714
        %v1900 = vunpack.c.l.b16 %v1715
        %v1901 = vunpack.c.h.b16 %v1715
        %v1902 = vunpack.c.l.b16 %v1716
        %v1903 = vunpack.c.l.b16 %v1717
        %v1904 = vunpack.c.h.b16 %v1717
        %v1905 = vunpack.c.l.b16 %v1718
        %v1906 = vunpack.c.h.b16 %v1718
        %v1907 = vunpack.c.l.b16 %v1719
        %v1908 = vunpack.c.h.b16 %v1719
        %v1909 = vunpack.c.l.b16 %v1720
        %v1910 = vunpack.c.l.b16 %v1721
        %v1911 = vunpack.c.h.b16 %v1721
        %v1912 = vunpack.c.l.b16 %v1722
        %v1913 = vunpack.c.h.b16 %v1722
        %v1914 = vunpack.c.l.b16 %v1723
        %v1915 = vunpack.c.h.b16 %v1723
        %v1916 = vunpack.c.l.b16 %v1724
        %v1917 = vunpack.c.l.b16 %v1725
        %v1918 = vunpack.c.h.b16 %v1725
        %v1919 = vunpack.c.l.b16 %v1726
        %v1920 = vunpack.c.h.b16 %v1726
        %v1921 = vunpack.c.l.b16 %v1727
        %v1922 = vunpack.c.h.b16 %v1727
        %v1923 = vunpack.c.l.b16 %v1728
        %v1924 = vunpack.c.l.b16 %v1729
        %v1925 = vunpack.c.h.b16 %v1729
        %v1926 = vunpack.c.l.b16 %v1730
        %v1927 = vunpack.c.h.b16 %v1730
        %v1928 = vunpack.c.l.b16 %v1731
        %v1929 = vunpack.c.h.b16 %v1731
        %v1930 = vunpack.c.l.b16 %v1732
        %v1931 = vunpack.c.l.b16 %v1733
        %v1932 = vunpack.c.h.b16 %v1733
        %v1933 = vunpack.c.l.b16 %v1734
        %v1934 = vunpack.c.h.b16 %v1734
        %v1935 = vunpack.c.l.b16 %v1735
        %v1936 = vunpack.c.h.b16 %v1735
        %v1937 = vunpack.c.l.b16 %v1736
        %v1938 = vunpack.c.l.b16 %v1737
        %v1939 = vunpack.c.h.b16 %v1737
        %v1940 = vunpack.c.l.b16 %v1738
        %v1941 = vunpack.c.h.b16 %v1738
        %v1942 = vunpack.c.l.b16 %v1739
        %v1943 = vunpack.c.h.b16 %v1739
        %v1944 = vunpack.c.l.b16 %v1740
        %v1945 = vunpack.c.l.b16 %v1741
        %v1946 = vunpack.c.h.b16 %v1741
        %v1947 = vunpack.c.l.b16 %v1742
        %v1948 = vunpack.c.h.b16 %v1742
        %v1949 = vunpack.c.l.b16 %v1743
        %v1950 = vunpack.c.h.b16 %v1743
        %v1951 = vunpack.c.l.b16 %v1744
        %v1952 = vunpack.c.l.b16 %v1745
        %v1953 = vunpack.c.h.b16 %v1745
        %v1954 = vunpack.c.l.b16 %v1746
        %v1955 = vunpack.c.h.b16 %v1746
        %v1956 = vunpack.c.l.b16 %v1747
        %v1957 = vunpack.c.h.b16 %v1747
        %v1958 = vunpack.c.l.b16 %v1748
        %v1959 = vunpack.c.l.b16 %v1749
        %v1960 = vunpack.c.h.b16 %v1749
        %v1961 = vunpack.c.l.b16 %v1750
        %v1962 = vunpack.c.h.b16 %v1750
        %v1963 = vunpack.c.l.b16 %v1751
        %v1964 = vunpack.c.h.b16 %v1751
        %v1965 = vunpack.c.l.b16 %v1752
        %v1966 = vpack.c.b16 %v1861, %v1854
        %v1967 = vpack.c.b16 %v1862, %v1855
        %v1968 = vpack.c.b16 %v1863, %v1856
        %v1969 = vpack.c.b16 %v1864, %v1857
        %v1970 = vpack.c.b16 %v1865, %v1858
        %v1971 = vpack.c.b16 %v1866, %v1859
        %v1972 = vpack.c.b16 %v1867, %v1860
        %v1973 = vpack.c.b16 %v1875, %v1868
        %v1974 = vpack.c.b16 %v1876, %v1869
        %v1975 = vpack.c.b16 %v1877, %v1870
        %v1976 = vpack.c.b16 %v1878, %v1871
        %v1977 = vpack.c.b16 %v1879, %v1872
        %v1978 = vpack.c.b16 %v1880, %v1873
        %v1979 = vpack.c.b16 %v1881, %v1874
        %v1980 = vpack.c.b16 %v1889, %v1882
        %v1981 = vpack.c.b16 %v1890, %v1883
        %v1982 = vpack.c.b16 %v1891, %v1884
        %v1983 = vpack.c.b16 %v1892, %v1885
        %v1984 = vpack.c.b16 %v1893, %v1886
        %v1985 = vpack.c.b16 %v1894, %v1887
        %v1986 = vpack.c.b16 %v1895, %v1888
        %v1987 = vpack.c.b16 %v1903, %v1896
        %v1988 = vpack.c.b16 %v1904, %v1897
        %v1989 = vpack.c.b16 %v1905, %v1898
        %v1990 = vpack.c.b16 %v1906, %v1899
        %v1991 = vpack.c.b16 %v1907, %v1900
        %v1992 = vpack.c.b16 %v1908, %v1901
        %v1993 = vpack.c.b16 %v1909, %v1902
        %v1994 = vpack.c.b16 %v1917, %v1910
        %v1995 = vpack.c.b16 %v1918, %v1911
        %v1996 = vpack.c.b16 %v1919, %v1912
        %v1997 = vpack.c.b16 %v1920, %v1913
        %v1998 = vpack.c.b16 %v1921, %v1914
        %v1999 = vpack.c.b16 %v1922, %v1915
        %v2000 = vpack.c.b16 %v1923, %v1916
        %v2001 = vpack.c.b16 %v1931, %v1924
        %v2002 = vpack.c.b16 %v1932, %v1925
        %v2003 = vpack.c.b16 %v1933, %v1926
        %v2004 = vpack.c.b16 %v1934, %v1927
        %v2005 = vpack.c.b16 %v1935, %v1928
        %v2006 = vpack.c.b16 %v1936, %v1929
        %v2007 = vpack.c.b16 %v1937, %v1930
        %v2008 = vpack.c.b16 %v1945, %v1938
        %v2009 = vpack.c.b16 %v1946, %v1939
        %v2010 = vpack.c.b16 %v1947, %v1940
        %v2011 = vpack.c.b16 %v1948, %v1941
        %v2012 = vpack.c.b16 %v1949, %v1942
        %v2013 = vpack.c.b16 %v1950, %v1943
        %v2014 = vpack.c.b16 %v1951, %v1944
        %v2015 = vpack.c.b16 %v1959, %v1952
        %v2016 = vpack.c.b16 %v1960, %v1953
        %v2017 = vpack.c.b16 %v1961, %v1954
        %v2018 = vpack.c.b16 %v1962, %v1955
        %v2019 = vpack.c.b16 %v1963, %v1956
        %v2020 = vpack.c.b16 %v1964, %v1957
        %v2021 = vpack.c.b16 %v1965, %v1958
        %2078 = vmatprep.subr.bf16.mxu0 %v2016
        %2079 = vmatpush1.bf16.msra.mxu0 %v2015
        %2080 = vmatprep.subr.bf16.mxu0 %v2009
        %2081 = vmatpush1.bf16.msra.mxu0 %v2008
        %2082 = vmatprep.subr.bf16.mxu0 %v2002
        %2083 = vmatpush1.bf16.msra.mxu0 %v2001
        %2084 = vmatprep.subr.bf16.mxu0 %v1995
        %2085 = vmatpush1.bf16.msra.mxu0 %v1994
        %2086 = vmatprep.subr.bf16.mxu0 %v1988
        %2087 = vmatpush1.bf16.msra.mxu0 %v1987
        %2088 = vmatprep.subr.bf16.mxu0 %v1981
        %2089 = vmatpush1.bf16.msra.mxu0 %v1980
        %2090 = vmatprep.subr.bf16.mxu0 %v1974
        %2091 = vmatpush1.bf16.msra.mxu0 %v1973
        %2092 = vmatprep.subr.bf16.mxu0 %v1967
        %2093 = vmatpush1.bf16.msra.mxu0 %v1966
        %2094 = vmatprep.subr.bf16.mxu0 0
        %2095 = vmatpush2.bf16.msra.mxu0 0
        %2096 = vmatprep.subr.bf16.mxu0 0
        %2097 = vmatpush2.bf16.msra.mxu0 0
        %2098 = vmatprep.subr.bf16.mxu0 0
        %2099 = vmatpush2.bf16.msra.mxu0 0
        %2100 = vmatprep.subr.bf16.mxu0 0
        %2101 = vmatpush2.bf16.msra.mxu0 0
        %2102 = vmatprep.subr.bf16.mxu0 0
        %2103 = vmatpush2.bf16.msra.mxu0 0
        %2104 = vmatprep.subr.bf16.mxu0 0
        %2105 = vmatpush2.bf16.msra.mxu0 0
        %2106 = vmatprep.subr.bf16.mxu0 0
        %2107 = vmatpush2.bf16.msra.mxu0 0
        %2108 = vmatprep.subr.bf16.mxu0 0
        %2109 = vmatpush2.bf16.msra.mxu0 0
        %2110 = vmatprep.mubr.bf16.mxu0 0
        %2111 = vmatmul.mubr.bf16.gmra.mxu0 %v1688
        %v2112 = vpop.f32.mrf.mxu0
        %v2113 = vadd.f32 %v1758, %v2112
        %v2114 = vpop.f32.mrf.mxu0
        %v2115 = vadd.f32 %v1762, %v2114
        %v2116 = vpop.f32.mrf.mxu0
        %v2117 = vadd.f32 %v1758, %v2116
        %v2118 = vpop.f32.mrf.mxu0
        %v2119 = vadd.f32 %v1762, %v2118
        %2120 = vdwg.mxu0
        %2121 = vmatprep.subr.bf16.mxu0 %v2018
        %2122 = vmatpush1.bf16.msra.mxu0 %v2017
        %2123 = vmatprep.subr.bf16.mxu0 %v2011
        %2124 = vmatpush1.bf16.msra.mxu0 %v2010
        %2125 = vmatprep.subr.bf16.mxu0 %v2004
        %2126 = vmatpush1.bf16.msra.mxu0 %v2003
        %2127 = vmatprep.subr.bf16.mxu0 %v1997
        %2128 = vmatpush1.bf16.msra.mxu0 %v1996
        %2129 = vmatprep.subr.bf16.mxu0 %v1990
        %2130 = vmatpush1.bf16.msra.mxu0 %v1989
        %2131 = vmatprep.subr.bf16.mxu0 %v1983
        %2132 = vmatpush1.bf16.msra.mxu0 %v1982
        %2133 = vmatprep.subr.bf16.mxu0 %v1976
        %2134 = vmatpush1.bf16.msra.mxu0 %v1975
        %2135 = vmatprep.subr.bf16.mxu0 %v1969
        %2136 = vmatpush1.bf16.msra.mxu0 %v1968
        %2137 = vmatprep.subr.bf16.mxu0 0
        %2138 = vmatpush2.bf16.msra.mxu0 0
        %2139 = vmatprep.subr.bf16.mxu0 0
        %2140 = vmatpush2.bf16.msra.mxu0 0
        %2141 = vmatprep.subr.bf16.mxu0 0
        %2142 = vmatpush2.bf16.msra.mxu0 0
        %2143 = vmatprep.subr.bf16.mxu0 0
        %2144 = vmatpush2.bf16.msra.mxu0 0
        %2145 = vmatprep.subr.bf16.mxu0 0
        %2146 = vmatpush2.bf16.msra.mxu0 0
        %2147 = vmatprep.subr.bf16.mxu0 0
        %2148 = vmatpush2.bf16.msra.mxu0 0
        %2149 = vmatprep.subr.bf16.mxu0 0
        %2150 = vmatpush2.bf16.msra.mxu0 0
        %2151 = vmatprep.subr.bf16.mxu0 0
        %2152 = vmatpush2.bf16.msra.mxu0 0
        %2153 = vmatprep.mubr.bf16.mxu0 0
        %2154 = vmatmul.mubr.bf16.gmra.mxu0 %v1688
        %v2155 = vpop.f32.mrf.mxu0
        %v2156 = vadd.f32 %v1766, %v2155
        %v2157 = vpop.f32.mrf.mxu0
        %v2158 = vadd.f32 %v1770, %v2157
        %v2159 = vpop.f32.mrf.mxu0
        %v2160 = vadd.f32 %v1766, %v2159
        %v2161 = vpop.f32.mrf.mxu0
        %v2162 = vadd.f32 %v1770, %v2161
        %2163 = vdwg.mxu0
        %2164 = vmatprep.subr.bf16.mxu0 %v2020
        %2165 = vmatpush1.bf16.msra.mxu0 %v2019
        %2166 = vmatprep.subr.bf16.mxu0 %v2013
        %2167 = vmatpush1.bf16.msra.mxu0 %v2012
        %2168 = vmatprep.subr.bf16.mxu0 %v2006
        %2169 = vmatpush1.bf16.msra.mxu0 %v2005
        %2170 = vmatprep.subr.bf16.mxu0 %v1999
        %2171 = vmatpush1.bf16.msra.mxu0 %v1998
        %2172 = vmatprep.subr.bf16.mxu0 %v1992
        %2173 = vmatpush1.bf16.msra.mxu0 %v1991
        %2174 = vmatprep.subr.bf16.mxu0 %v1985
        %2175 = vmatpush1.bf16.msra.mxu0 %v1984
        %2176 = vmatprep.subr.bf16.mxu0 %v1978
        %2177 = vmatpush1.bf16.msra.mxu0 %v1977
        %2178 = vmatprep.subr.bf16.mxu0 %v1971
        %2179 = vmatpush1.bf16.msra.mxu0 %v1970
        %2180 = vmatprep.subr.bf16.mxu0 0
        %2181 = vmatpush2.bf16.msra.mxu0 0
        %2182 = vmatprep.subr.bf16.mxu0 0
        %2183 = vmatpush2.bf16.msra.mxu0 0
        %2184 = vmatprep.subr.bf16.mxu0 0
        %2185 = vmatpush2.bf16.msra.mxu0 0
        %2186 = vmatprep.subr.bf16.mxu0 0
        %2187 = vmatpush2.bf16.msra.mxu0 0
        %2188 = vmatprep.subr.bf16.mxu0 0
        %2189 = vmatpush2.bf16.msra.mxu0 0
        %2190 = vmatprep.subr.bf16.mxu0 0
        %2191 = vmatpush2.bf16.msra.mxu0 0
        %2192 = vmatprep.subr.bf16.mxu0 0
        %2193 = vmatpush2.bf16.msra.mxu0 0
        %2194 = vmatprep.subr.bf16.mxu0 0
        %2195 = vmatpush2.bf16.msra.mxu0 0
        %2196 = vmatprep.mubr.bf16.mxu0 0
        %2197 = vmatmul.mubr.bf16.gmra.mxu0 %v1688
        %v2198 = vpop.f32.mrf.mxu0
        %v2199 = vadd.f32 %v1774, %v2198
        %v2200 = vpop.f32.mrf.mxu0
        %v2201 = vadd.f32 %v1778, %v2200
        %v2202 = vpop.f32.mrf.mxu0
        %v2203 = vadd.f32 %v1774, %v2202
        %v2204 = vpop.f32.mrf.mxu0
        %v2205 = vadd.f32 %v1778, %v2204
        %2206 = vdwg.mxu0
        %2207 = vmatprep.subr.bf16.mxu0 0
        %2208 = vmatpush1.bf16.msra.mxu0 %v2021
        %2209 = vmatprep.subr.bf16.mxu0 0
        %2210 = vmatpush1.bf16.msra.mxu0 %v2014
        %2211 = vmatprep.subr.bf16.mxu0 0
        %2212 = vmatpush1.bf16.msra.mxu0 %v2007
        %2213 = vmatprep.subr.bf16.mxu0 0
        %2214 = vmatpush1.bf16.msra.mxu0 %v2000
        %2215 = vmatprep.subr.bf16.mxu0 0
        %2216 = vmatpush1.bf16.msra.mxu0 %v1993
        %2217 = vmatprep.subr.bf16.mxu0 0
        %2218 = vmatpush1.bf16.msra.mxu0 %v1986
        %2219 = vmatprep.subr.bf16.mxu0 0
        %2220 = vmatpush1.bf16.msra.mxu0 %v1979
        %2221 = vmatprep.subr.bf16.mxu0 0
        %2222 = vmatpush1.bf16.msra.mxu0 %v1972
        %2223 = vmatprep.subr.bf16.mxu0 0
        %2224 = vmatpush2.bf16.msra.mxu0 0
        %2225 = vmatprep.subr.bf16.mxu0 0
        %2226 = vmatpush2.bf16.msra.mxu0 0
        %2227 = vmatprep.subr.bf16.mxu0 0
        %2228 = vmatpush2.bf16.msra.mxu0 0
        %2229 = vmatprep.subr.bf16.mxu0 0
        %2230 = vmatpush2.bf16.msra.mxu0 0
        %2231 = vmatprep.subr.bf16.mxu0 0
        %2232 = vmatpush2.bf16.msra.mxu0 0
        %2233 = vmatprep.subr.bf16.mxu0 0
        %2234 = vmatpush2.bf16.msra.mxu0 0
        %2235 = vmatprep.subr.bf16.mxu0 0
        %2236 = vmatpush2.bf16.msra.mxu0 0
        %2237 = vmatprep.subr.bf16.mxu0 0
        %2238 = vmatpush2.bf16.msra.mxu0 0
        %2239 = vmatprep.mubr.bf16.mxu0 0
        %2240 = vmatmul.mubr.bf16.gmra.mxu0 %v1688
        %v2241 = vpop.f32.mrf.mxu0
        %v2242 = vadd.f32 %v1782, %v2241
        %v2243 = vpop.f32.mrf.mxu0
        %v2244 = vpop.f32.mrf.mxu0
        %v2245 = vadd.f32 %v1782, %v2244
        %v2246 = vpop.f32.mrf.mxu0
        %2247 = vdwg.mxu0
        %v2248 = vxor.u32 %v2113, 2147483648
        %v2249 = vxor.u32 %v2115, 2147483648
        %v2250 = vxor.u32 %v2156, 2147483648
        %v2251 = vxor.u32 %v2158, 2147483648
        %v2252 = vxor.u32 %v2199, 2147483648
        %v2253 = vxor.u32 %v2201, 2147483648
        %v2254 = vxor.u32 %v2242, 2147483648
        %v2255 = vxor.u32 %v2117, 2147483648
        %v2256 = vxor.u32 %v2119, 2147483648
        %v2257 = vxor.u32 %v2160, 2147483648
        %v2258 = vxor.u32 %v2162, 2147483648
        %v2259 = vxor.u32 %v2203, 2147483648
        %v2260 = vxor.u32 %v2205, 2147483648
        %v2261 = vxor.u32 %v2245, 2147483648
        %v2262 = vmul.f32 %v2248, 1.442695
        %v2263 = vpow.pop %v2262
        %v2264 = vmul.f32 %v2249, 1.442695
        %v2265 = vpow.pop %v2264
        %v2266 = vmul.f32 %v2250, 1.442695
        %v2267 = vpow.pop %v2266
        %v2268 = vmul.f32 %v2251, 1.442695
        %v2269 = vpow.pop %v2268
        %v2270 = vmul.f32 %v2252, 1.442695
        %v2271 = vpow.pop %v2270
        %v2272 = vmul.f32 %v2253, 1.442695
        %v2273 = vpow.pop %v2272
        %v2274 = vmul.f32 %v2254, 1.442695
        %v2275 = vpow.pop %v2274
        %v2276 = vmul.f32 %v2255, 1.442695
        %v2277 = vpow.pop %v2276
        %v2278 = vmul.f32 %v2256, 1.442695
        %v2279 = vpow.pop %v2278
        %v2280 = vmul.f32 %v2257, 1.442695
        %v2281 = vpow.pop %v2280
        %v2282 = vmul.f32 %v2258, 1.442695
        %v2283 = vpow.pop %v2282
        %v2284 = vmul.f32 %v2259, 1.442695
        %v2285 = vpow.pop %v2284
        %v2286 = vmul.f32 %v2260, 1.442695
        %v2287 = vpow.pop %v2286
        %v2288 = vmul.f32 %v2261, 1.442695
        %v2289 = vpow.pop %v2288
        %v2290 = vadd.f32 %v2263, 1.0
        %v2291 = vadd.f32 %v2265, 1.0
        %v2292 = vadd.f32 %v2267, 1.0
        %v2293 = vadd.f32 %v2269, 1.0
        %v2294 = vadd.f32 %v2271, 1.0
        %v2295 = vadd.f32 %v2273, 1.0
        %v2296 = vadd.f32 %v2275, 1.0
        %v2297 = vadd.f32 %v2277, 1.0
        %v2298 = vadd.f32 %v2279, 1.0
        %v2299 = vadd.f32 %v2281, 1.0
        %v2300 = vadd.f32 %v2283, 1.0
        %v2301 = vadd.f32 %v2285, 1.0
        %v2302 = vadd.f32 %v2287, 1.0
        %v2303 = vadd.f32 %v2289, 1.0
        %v2304 = vrcp.pop %v2290
        %v2305 = vmul.f32 1.0, %v2304
        %v2306 = vrcp.pop %v2291
        %v2307 = vmul.f32 1.0, %v2306
        %v2308 = vrcp.pop %v2292
        %v2309 = vmul.f32 1.0, %v2308
        %v2310 = vrcp.pop %v2293
        %v2311 = vmul.f32 1.0, %v2310
        %v2312 = vrcp.pop %v2294
        %v2313 = vmul.f32 1.0, %v2312
        %v2314 = vrcp.pop %v2295
        %v2315 = vmul.f32 1.0, %v2314
        %v2316 = vrcp.pop %v2296
        %v2317 = vmul.f32 1.0, %v2316
        %v2318 = vrcp.pop %v2297
        %v2319 = vmul.f32 1.0, %v2318
        %v2320 = vrcp.pop %v2298
        %v2321 = vmul.f32 1.0, %v2320
        %v2322 = vrcp.pop %v2299
        %v2323 = vmul.f32 1.0, %v2322
        %v2324 = vrcp.pop %v2300
        %v2325 = vmul.f32 1.0, %v2324
        %v2326 = vrcp.pop %v2301
        %v2327 = vmul.f32 1.0, %v2326
        %v2328 = vrcp.pop %v2302
        %v2329 = vmul.f32 1.0, %v2328
        %v2330 = vrcp.pop %v2303
        %v2331 = vmul.f32 1.0, %v2330
        %v2332 = vpack.c.bf16 %v2319, %v2305
        %v2333 = vpack.c.bf16 %v2321, %v2307
        %v2334 = vpack.c.bf16 %v2323, %v2309
        %v2335 = vpack.c.bf16 %v2325, %v2311
        %v2336 = vpack.c.bf16 %v2327, %v2313
        %v2337 = vpack.c.bf16 %v2329, %v2315
        %v2338 = vpack.c.bf16 %v2331, %v2317
        %v2346 = vunpack.c.l.b16 %v2332
        %v2347 = vunpack.c.l.b16 %v2333
        %v2348 = vunpack.c.l.b16 %v2334
        %v2349 = vunpack.c.l.b16 %v2335
        %v2350 = vunpack.c.l.b16 %v2336
        %v2351 = vunpack.c.l.b16 %v2337
        %v2352 = vunpack.c.l.b16 %v2338
        %v2353 = vunpack.c.h.b16 %v2332
        %v2354 = vunpack.c.h.b16 %v2333
        %v2355 = vunpack.c.h.b16 %v2334
        %v2356 = vunpack.c.h.b16 %v2335
        %v2357 = vunpack.c.h.b16 %v2336
        %v2358 = vunpack.c.h.b16 %v2337
        %v2359 = vunpack.c.h.b16 %v2338
        %v2360 = vpack.c.b16 %v2347, %v2346
        %v2361 = vpack.c.b16 %v2349, %v2348
        %v2362 = vpack.c.b16 %v2351, %v2350
        %v2363 = vpack.c.b16 %v2352, %v2352
        %v2364 = vpack.c.b16 %v2354, %v2353
        %v2365 = vpack.c.b16 %v2356, %v2355
        %v2366 = vpack.c.b16 %v2358, %v2357
        %v2367 = vpack.c.b16 %v2359, %v2359
        %2376 = vst [vmem:[%s579] sm:$0xff] %v2360
        %2377 = vst [vmem:[%s579 + $0x8] sm:$0xff] %v2361
        %2378 = vst [vmem:[%s579 + $0x10] sm:$0xff] %v2362
        %vm2379 = vcmask 125952
        %2380 = vst.msk [vmem:[%s579 + $0x18] sm:$0xf] %vm2379, %v2363
        %2381 = vst [vmem:[%s579 + $0x1c] sm:$0xff] %v2364
        %2382 = vst [vmem:[%s579 + $0x24] sm:$0xff] %v2365
        %2383 = vst [vmem:[%s579 + $0x2c] sm:$0xff] %v2366
        %2384 = vst.msk [vmem:[%s579 + $0x34] sm:$0xf] %vm2379, %v2367
        %s2385 = smul.u32 2, %s33
        %p2386 = scmp.lt.s32.totalorder %s2385, 3
        %s2387 = scalar_select %p2386, %s2385, 3
        %s2388 = smul.addr %s2387, 8
        %s2389 = scalar_lea.vmem %s17, %s2388
        %s2390 = sand.u32 %s429, 1
        %s2391 = scalar_lea.sflag [#allocation3], %s2390
        %s2392 = sand.u32 %s429, 1
        %s2393 = smul.addr %s2392, 56
        %s2394 = scalar_lea.vmem [#allocation2], %s2393
        // Predicated region
        $region89: #{tpu_custom_call.1} parent=87 // pred_check
          %p2395 = pneg %p413
        $region90: #{tpu_custom_call.1} parent=87 // pred_check_branch
          %2397 = sbr.rel (%p2395) target = $region92
        $region91: #{tpu_custom_call.1} parent=87 // pred_region
          %s2398 = smul.u32 2, %s33
        $region92: #{tpu_custom_call.1} parent=87 // pred_fallthru
          _
        // Predicated region
        $region93: #{tpu_custom_call.1} parent=87 // pred_check
          %p2399 = pneg %p439
        $region94: #{tpu_custom_call.1} parent=87 // pred_check_branch
          %2401 = sbr.rel (%p2399) target = $region96
        $region95: #{tpu_custom_call.1} parent=87 // pred_region
          %s2402 = smul.u32 2, %s33
          %s2404 = ssub.s32 896, 896
          %2405 = vsyncadd %s2391, %s2404
          %s2406 = smul.addr %s2402, 7
          %s2407 = smul.addr %s2406, 64
          %s2408 = scalar_lea.hbm %s18, %s2407
          %s2409 = sshll.u32 %s2394, 4
          %s2410 = int_to_ptr.vmem [resolvable:$true] %s2409
          %2415 = dma.vmem_to_hbm [thread:$0]  %s2410, 896, %s2408, %s2391, 448, 448, 28
        $region96: #{tpu_custom_call.1} parent=87 // pred_fallthru
          _
      $region88: #{tpu_custom_call.1} parent=5 // pred_fallthru
        _
      %p2416 = scmp.le.s32.totalorder 2, %s28
      // Predicated region
      $region97: #{tpu_custom_call.1} parent=5 // pred_check
        %p2417 = pneg %p2416
      $region98: #{tpu_custom_call.1} parent=5 // pred_check_branch
        %2419 = sbr.rel (%p2417) target = $region100
      $region99: #{tpu_custom_call.1} parent=5 // pred_region
        %s2420 = ssub.s32 %s28, 2
        // Predicated region
        $region101: #{tpu_custom_call.1} parent=99 // pred_check
          %p2421 = pneg %p419
        $region102: #{tpu_custom_call.1} parent=99 // pred_check_branch
          %2423 = sbr.rel (%p2421) target = $region104
        $region103: #{tpu_custom_call.1} parent=99 // pred_region
          %s2424 = smul.u32 2, %s34
          %p2425 = scmp.lt.s32.totalorder %s2424, 3
          %s2426 = scalar_select %p2425, %s2424, 3
          %s2427 = smul.addr %s2426, 8
          %s2428 = scalar_lea.vmem %s17, %s2427
        $region104: #{tpu_custom_call.1} parent=99 // pred_fallthru
          _
        // Predicated region
        $region105: #{tpu_custom_call.1} parent=99 // pred_check
          %p2429 = pneg %p445
        $region106: #{tpu_custom_call.1} parent=99 // pred_check_branch
          %2431 = sbr.rel (%p2429) target = $region108
        $region107: #{tpu_custom_call.1} parent=99 // pred_region
          %s2432 = sand.u32 %s430, 1
          %s2433 = scalar_lea.sflag [#allocation3], %s2432
          %s2434 = sand.u32 %s430, 1
          %s2435 = smul.addr %s2434, 56
          %s2436 = scalar_lea.vmem [#allocation2], %s2435
          %2437 = dma.done %s2433, 896
        $region108: #{tpu_custom_call.1} parent=99 // pred_fallthru
          _
      $region100: #{tpu_custom_call.1} parent=5 // pred_fallthru
        _
    $region6: #{tpu_custom_call.1} parent=1 // loop_footer
      %s32 = sadd.s32 1, %s28
    $region7: #{tpu_custom_call.1} parent=1 // loop_footer_branch
      %27 = sbr.rel target = $region3
    $region8: #{tpu_custom_call.1} parent=1 // loop_exit
      _
    %2438 = vsyncpa [#allocation3], 1
    %s2439 = scalar_lea.sflag [#allocation3], 1
    %2440 = vsyncpa %s2439, 1

</llo_original>
